<compile_context>
chip_gen: v5e
topology: v5e:2x2
jax: 0.10.0
libtpu: 0.0.40
codegen_flags: <defaults>
</compile_context>

<pallas_src>
import functools

import jax
import jax.numpy as jnp
import numpy as np
from jax.experimental import pallas as pl
from jax.experimental.pallas import tpu as pltpu


def _conv3x3_reflect_kernel(w_ref, b_ref, x_ref, o_ref, *, H, W, Cin, Cout,
                            apply_tanh):
    """One image per grid step.

    w_ref : SMEM (Cout*Cin*9,) f32 — C-order flatten of PyTorch OIHW 3x3.
    b_ref : SMEM (Cout,) f32.
    x_ref : VMEM (1, Cin, H, W) unpadded NCHW input block.
    o_ref : VMEM (1, Cout, H, W) NCHW output block.
    """
    x = x_ref[0].astype(jnp.float32)                     # (Cin, H, W)

    # In-VMEM ReflectionPad2d(1): col 0 <- col 1, col W+1 <- col W-2, then the
    # same along rows on the width-padded slab (corners fall out correctly).
    xw = jnp.concatenate([x[:, :, 1:2], x, x[:, :, W - 2:W - 1]], axis=2)
    xp = jnp.concatenate([xw[:, 1:2, :], xw, xw[:, H - 2:H - 1, :]], axis=1)
    # xp: (Cin, H+2, W+2)

    acc = [jnp.zeros((H, W), jnp.float32) for _ in range(Cout)]
    for ci in range(Cin):
        for di in range(3):
            for dj in range(3):
                # Shifted tap window: static sublane/lane slice, no reshape.
                win = xp[ci, di:di + H, dj:dj + W]        # (H, W)
                for co in range(Cout):
                    wv = w_ref[((co * Cin + ci) * 3 + di) * 3 + dj]
                    acc[co] = acc[co] + wv * win          # scalar-bcast FMA

    for co in range(Cout):
        y = acc[co] + b_ref[co]                           # fused bias
        if apply_tanh:
            y = jnp.tanh(y)                               # fused tanh (EUP)
        o_ref[0, co] = y.astype(o_ref.dtype)


def conv3x3_reflect_act_pallas(x, w, b, apply_tanh=True):
    """x: (N, Cin, H, W) NCHW; w: (Cout, Cin, 3, 3) OIHW; b: (Cout,)."""
    N, Cin, H, W = x.shape
    Cout = w.shape[0]
    assert w.shape == (Cout, Cin, 3, 3), w.shape
    assert H >= 2 and W >= 2, "ReflectionPad2d(1) requires H, W >= 2"

    w_flat = w.astype(jnp.float32).reshape(Cout * Cin * 9)
    b_flat = b.astype(jnp.float32).reshape(Cout)

    kernel = functools.partial(_conv3x3_reflect_kernel, H=H, W=W, Cin=Cin,
                               Cout=Cout, apply_tanh=apply_tanh)
    return pl.pallas_call(
        kernel,
        out_shape=jax.ShapeDtypeStruct((N, Cout, H, W), x.dtype),
        grid=(N,),
        in_specs=[
            pl.BlockSpec(memory_space=pltpu.MemorySpace.SMEM),    # weights
            pl.BlockSpec(memory_space=pltpu.MemorySpace.SMEM),    # bias
            pl.BlockSpec((1, Cin, H, W), lambda n: (n, 0, 0, 0)),
        ],
        out_specs=pl.BlockSpec((1, Cout, H, W), lambda n: (n, 0, 0, 0)),
        compiler_params=pltpu.CompilerParams(
            dimension_semantics=("parallel",)),
    )(w_flat, b_flat, x)


def get_image_forward(params, x, activation="tanh"):
    """Get_image.forward: ReflectionPad2d(1) -> Conv2d(3x3, s=1, bias) -> tanh."""
    return conv3x3_reflect_act_pallas(x, params["w"], params["b"],
                                      apply_tanh=(activation == "tanh"))


def get_image_reference(params, x, activation="tanh"):
    """Pure-JAX reference (XLA conv) for correctness checking."""
    xp = jnp.pad(x, ((0, 0), (0, 0), (1, 1), (1, 1)), mode="reflect")
    y = jax.lax.conv_general_dilated(
        xp, params["w"], window_strides=(1, 1), padding="VALID",
        dimension_numbers=("NCHW", "OIHW", "NCHW"),
        precision=jax.lax.Precision.HIGHEST)
    y = y + params["b"].reshape(1, -1, 1, 1)
    return jnp.tanh(y) if activation == "tanh" else y


def init_get_image(key, input_dim, output_dim, k=3):
    """Deterministic synthetic Conv2d parameters (PyTorch OIHW layout)."""
    k1, k2 = jax.random.split(key)
    fan_in = input_dim * k * k
    w = jax.random.normal(k1, (output_dim, input_dim, k, k),
                          jnp.float32) / jnp.sqrt(fan_in)
    b = 0.05 * jax.random.normal(k2, (output_dim,), jnp.float32)
    return {"w": w, "b": b}


if __name__ == "__main__":
    key = jax.random.PRNGKey(0)
    kp, kx = jax.random.split(key)
    input_dim, output_dim = 4, 3
    params = init_get_image(kp, input_dim, output_dim)
    x = jax.random.normal(kx, (2, input_dim, 16, 16), jnp.float32)

    fwd = jax.jit(get_image_forward)
    out = jax.block_until_ready(fwd(params, x))

    assert out.shape == (2, output_dim, 16, 16), out.shape
    assert out.dtype == jnp.float32
    ref = get_image_reference(params, x)
    np.testing.assert_allclose(np.asarray(out), np.asarray(ref),
                               rtol=1e-4, atol=1e-5)
    print("KERNEL_OK")
</pallas_src>

<mosaic_0001>
module attributes {stable_mosaic.version = 11 : i64} {
  func.func @_conv3x3_reflect_kernel(%arg0: i32, %arg1: memref<108xf32, #tpu.memory_space<smem>>, %arg2: memref<3xf32, #tpu.memory_space<smem>>, %arg3: memref<1x4x16x16xf32, #tpu.memory_space<vmem>>, %arg4: memref<1x3x16x16xf32, #tpu.memory_space<vmem>>) attributes {dimension_semantics = [#tpu.dimension_semantics<parallel>], iteration_bounds = array<i64: 2>, scalar_prefetch = 0 : i64, scratch_operands = 0 : i64, tpu.core_type = #tpu.core_type<tc>, window_params = [{transform_indices = @transform_0, window_bounds = array<i64: 108>}, {transform_indices = @transform_1, window_bounds = array<i64: 3>}, {transform_indices = @transform_2, window_bounds = array<i64: 1, 4, 16, 16>}, {transform_indices = @transform_3, window_bounds = array<i64: 1, 3, 16, 16>}]} {
    %c0 = arith.constant 0 : index
    %c0_0 = arith.constant 0 : index
    %c0_1 = arith.constant 0 : index
    %c0_2 = arith.constant 0 : index
    %0 = vector.load %arg3[%c0, %c0_0, %c0_1, %c0_2] : memref<1x4x16x16xf32, #tpu.memory_space<vmem>>, vector<1x4x16x16xf32>
    %1 = vector.shape_cast %0 : vector<1x4x16x16xf32> to vector<4x16x16xf32>
    %2 = vector.extract_strided_slice %1 {offsets = [0, 0, 1], sizes = [4, 16, 1], strides = [1, 1, 1]} : vector<4x16x16xf32> to vector<4x16x1xf32>
    %3 = vector.extract_strided_slice %1 {offsets = [0, 0, 14], sizes = [4, 16, 1], strides = [1, 1, 1]} : vector<4x16x16xf32> to vector<4x16x1xf32>
    %4 = tpu.concatenate %2, %1, %3 in 2 : vector<4x16x1xf32>, vector<4x16x16xf32>, vector<4x16x1xf32> -> vector<4x16x18xf32>
    %5 = vector.extract_strided_slice %4 {offsets = [0, 1, 0], sizes = [4, 1, 18], strides = [1, 1, 1]} : vector<4x16x18xf32> to vector<4x1x18xf32>
    %6 = vector.extract_strided_slice %4 {offsets = [0, 14, 0], sizes = [4, 1, 18], strides = [1, 1, 1]} : vector<4x16x18xf32> to vector<4x1x18xf32>
    %7 = tpu.concatenate %5, %4, %6 in 1 : vector<4x1x18xf32>, vector<4x16x18xf32>, vector<4x1x18xf32> -> vector<4x18x18xf32>
    %cst = arith.constant 0.000000e+00 : f32
    %8 = vector.broadcast %cst : f32 to vector<16x16xf32>
    %cst_3 = arith.constant 0.000000e+00 : f32
    %9 = vector.broadcast %cst_3 : f32 to vector<16x16xf32>
    %cst_4 = arith.constant 0.000000e+00 : f32
    %10 = vector.broadcast %cst_4 : f32 to vector<16x16xf32>
    %11 = vector.extract_strided_slice %7 {offsets = [0, 0, 0], sizes = [1, 16, 16], strides = [1, 1, 1]} : vector<4x18x18xf32> to vector<1x16x16xf32>
    %12 = vector.shape_cast %11 : vector<1x16x16xf32> to vector<16x16xf32>
    %c0_5 = arith.constant 0 : index
    %13 = memref.load %arg1[%c0_5] : memref<108xf32, #tpu.memory_space<smem>>
    %14 = vector.broadcast %13 : f32 to vector<16x16xf32>
    %15 = arith.mulf %14, %12 : vector<16x16xf32>
    %16 = arith.addf %8, %15 : vector<16x16xf32>
    %c36 = arith.constant 36 : index
    %17 = memref.load %arg1[%c36] : memref<108xf32, #tpu.memory_space<smem>>
    %18 = vector.broadcast %17 : f32 to vector<16x16xf32>
    %19 = arith.mulf %18, %12 : vector<16x16xf32>
    %20 = arith.addf %9, %19 : vector<16x16xf32>
    %c72 = arith.constant 72 : index
    %21 = memref.load %arg1[%c72] : memref<108xf32, #tpu.memory_space<smem>>
    %22 = vector.broadcast %21 : f32 to vector<16x16xf32>
    %23 = arith.mulf %22, %12 : vector<16x16xf32>
    %24 = arith.addf %10, %23 : vector<16x16xf32>
    %25 = vector.extract_strided_slice %7 {offsets = [0, 0, 1], sizes = [1, 16, 16], strides = [1, 1, 1]} : vector<4x18x18xf32> to vector<1x16x16xf32>
    %26 = vector.shape_cast %25 : vector<1x16x16xf32> to vector<16x16xf32>
    %c1 = arith.constant 1 : index
    %27 = memref.load %arg1[%c1] : memref<108xf32, #tpu.memory_space<smem>>
    %28 = vector.broadcast %27 : f32 to vector<16x16xf32>
    %29 = arith.mulf %28, %26 : vector<16x16xf32>
    %30 = arith.addf %16, %29 : vector<16x16xf32>
    %c37 = arith.constant 37 : index
    %31 = memref.load %arg1[%c37] : memref<108xf32, #tpu.memory_space<smem>>
    %32 = vector.broadcast %31 : f32 to vector<16x16xf32>
    %33 = arith.mulf %32, %26 : vector<16x16xf32>
    %34 = arith.addf %20, %33 : vector<16x16xf32>
    %c73 = arith.constant 73 : index
    %35 = memref.load %arg1[%c73] : memref<108xf32, #tpu.memory_space<smem>>
    %36 = vector.broadcast %35 : f32 to vector<16x16xf32>
    %37 = arith.mulf %36, %26 : vector<16x16xf32>
    %38 = arith.addf %24, %37 : vector<16x16xf32>
    %39 = vector.extract_strided_slice %7 {offsets = [0, 0, 2], sizes = [1, 16, 16], strides = [1, 1, 1]} : vector<4x18x18xf32> to vector<1x16x16xf32>
    %40 = vector.shape_cast %39 : vector<1x16x16xf32> to vector<16x16xf32>
    %c2 = arith.constant 2 : index
    %41 = memref.load %arg1[%c2] : memref<108xf32, #tpu.memory_space<smem>>
    %42 = vector.broadcast %41 : f32 to vector<16x16xf32>
    %43 = arith.mulf %42, %40 : vector<16x16xf32>
    %44 = arith.addf %30, %43 : vector<16x16xf32>
    %c38 = arith.constant 38 : index
    %45 = memref.load %arg1[%c38] : memref<108xf32, #tpu.memory_space<smem>>
    %46 = vector.broadcast %45 : f32 to vector<16x16xf32>
    %47 = arith.mulf %46, %40 : vector<16x16xf32>
    %48 = arith.addf %34, %47 : vector<16x16xf32>
    %c74 = arith.constant 74 : index
    %49 = memref.load %arg1[%c74] : memref<108xf32, #tpu.memory_space<smem>>
    %50 = vector.broadcast %49 : f32 to vector<16x16xf32>
    %51 = arith.mulf %50, %40 : vector<16x16xf32>
    %52 = arith.addf %38, %51 : vector<16x16xf32>
    %53 = vector.extract_strided_slice %7 {offsets = [0, 1, 0], sizes = [1, 16, 16], strides = [1, 1, 1]} : vector<4x18x18xf32> to vector<1x16x16xf32>
    %54 = vector.shape_cast %53 : vector<1x16x16xf32> to vector<16x16xf32>
    %c3 = arith.constant 3 : index
    %55 = memref.load %arg1[%c3] : memref<108xf32, #tpu.memory_space<smem>>
    %56 = vector.broadcast %55 : f32 to vector<16x16xf32>
    %57 = arith.mulf %56, %54 : vector<16x16xf32>
    %58 = arith.addf %44, %57 : vector<16x16xf32>
    %c39 = arith.constant 39 : index
    %59 = memref.load %arg1[%c39] : memref<108xf32, #tpu.memory_space<smem>>
    %60 = vector.broadcast %59 : f32 to vector<16x16xf32>
    %61 = arith.mulf %60, %54 : vector<16x16xf32>
    %62 = arith.addf %48, %61 : vector<16x16xf32>
    %c75 = arith.constant 75 : index
    %63 = memref.load %arg1[%c75] : memref<108xf32, #tpu.memory_space<smem>>
    %64 = vector.broadcast %63 : f32 to vector<16x16xf32>
    %65 = arith.mulf %64, %54 : vector<16x16xf32>
    %66 = arith.addf %52, %65 : vector<16x16xf32>
    %67 = vector.extract_strided_slice %7 {offsets = [0, 1, 1], sizes = [1, 16, 16], strides = [1, 1, 1]} : vector<4x18x18xf32> to vector<1x16x16xf32>
    %68 = vector.shape_cast %67 : vector<1x16x16xf32> to vector<16x16xf32>
    %c4 = arith.constant 4 : index
    %69 = memref.load %arg1[%c4] : memref<108xf32, #tpu.memory_space<smem>>
    %70 = vector.broadcast %69 : f32 to vector<16x16xf32>
    %71 = arith.mulf %70, %68 : vector<16x16xf32>
    %72 = arith.addf %58, %71 : vector<16x16xf32>
    %c40 = arith.constant 40 : index
    %73 = memref.load %arg1[%c40] : memref<108xf32, #tpu.memory_space<smem>>
    %74 = vector.broadcast %73 : f32 to vector<16x16xf32>
    %75 = arith.mulf %74, %68 : vector<16x16xf32>
    %76 = arith.addf %62, %75 : vector<16x16xf32>
    %c76 = arith.constant 76 : index
    %77 = memref.load %arg1[%c76] : memref<108xf32, #tpu.memory_space<smem>>
    %78 = vector.broadcast %77 : f32 to vector<16x16xf32>
    %79 = arith.mulf %78, %68 : vector<16x16xf32>
    %80 = arith.addf %66, %79 : vector<16x16xf32>
    %81 = vector.extract_strided_slice %7 {offsets = [0, 1, 2], sizes = [1, 16, 16], strides = [1, 1, 1]} : vector<4x18x18xf32> to vector<1x16x16xf32>
    %82 = vector.shape_cast %81 : vector<1x16x16xf32> to vector<16x16xf32>
    %c5 = arith.constant 5 : index
    %83 = memref.load %arg1[%c5] : memref<108xf32, #tpu.memory_space<smem>>
    %84 = vector.broadcast %83 : f32 to vector<16x16xf32>
    %85 = arith.mulf %84, %82 : vector<16x16xf32>
    %86 = arith.addf %72, %85 : vector<16x16xf32>
    %c41 = arith.constant 41 : index
    %87 = memref.load %arg1[%c41] : memref<108xf32, #tpu.memory_space<smem>>
    %88 = vector.broadcast %87 : f32 to vector<16x16xf32>
    %89 = arith.mulf %88, %82 : vector<16x16xf32>
    %90 = arith.addf %76, %89 : vector<16x16xf32>
    %c77 = arith.constant 77 : index
    %91 = memref.load %arg1[%c77] : memref<108xf32, #tpu.memory_space<smem>>
    %92 = vector.broadcast %91 : f32 to vector<16x16xf32>
    %93 = arith.mulf %92, %82 : vector<16x16xf32>
    %94 = arith.addf %80, %93 : vector<16x16xf32>
    %95 = vector.extract_strided_slice %7 {offsets = [0, 2, 0], sizes = [1, 16, 16], strides = [1, 1, 1]} : vector<4x18x18xf32> to vector<1x16x16xf32>
    %96 = vector.shape_cast %95 : vector<1x16x16xf32> to vector<16x16xf32>
    %c6 = arith.constant 6 : index
    %97 = memref.load %arg1[%c6] : memref<108xf32, #tpu.memory_space<smem>>
    %98 = vector.broadcast %97 : f32 to vector<16x16xf32>
    %99 = arith.mulf %98, %96 : vector<16x16xf32>
    %100 = arith.addf %86, %99 : vector<16x16xf32>
    %c42 = arith.constant 42 : index
    %101 = memref.load %arg1[%c42] : memref<108xf32, #tpu.memory_space<smem>>
    %102 = vector.broadcast %101 : f32 to vector<16x16xf32>
    %103 = arith.mulf %102, %96 : vector<16x16xf32>
    %104 = arith.addf %90, %103 : vector<16x16xf32>
    %c78 = arith.constant 78 : index
    %105 = memref.load %arg1[%c78] : memref<108xf32, #tpu.memory_space<smem>>
    %106 = vector.broadcast %105 : f32 to vector<16x16xf32>
    %107 = arith.mulf %106, %96 : vector<16x16xf32>
    %108 = arith.addf %94, %107 : vector<16x16xf32>
    %109 = vector.extract_strided_slice %7 {offsets = [0, 2, 1], sizes = [1, 16, 16], strides = [1, 1, 1]} : vector<4x18x18xf32> to vector<1x16x16xf32>
    %110 = vector.shape_cast %109 : vector<1x16x16xf32> to vector<16x16xf32>
    %c7 = arith.constant 7 : index
    %111 = memref.load %arg1[%c7] : memref<108xf32, #tpu.memory_space<smem>>
    %112 = vector.broadcast %111 : f32 to vector<16x16xf32>
    %113 = arith.mulf %112, %110 : vector<16x16xf32>
    %114 = arith.addf %100, %113 : vector<16x16xf32>
    %c43 = arith.constant 43 : index
    %115 = memref.load %arg1[%c43] : memref<108xf32, #tpu.memory_space<smem>>
    %116 = vector.broadcast %115 : f32 to vector<16x16xf32>
    %117 = arith.mulf %116, %110 : vector<16x16xf32>
    %118 = arith.addf %104, %117 : vector<16x16xf32>
    %c79 = arith.constant 79 : index
    %119 = memref.load %arg1[%c79] : memref<108xf32, #tpu.memory_space<smem>>
    %120 = vector.broadcast %119 : f32 to vector<16x16xf32>
    %121 = arith.mulf %120, %110 : vector<16x16xf32>
    %122 = arith.addf %108, %121 : vector<16x16xf32>
    %123 = vector.extract_strided_slice %7 {offsets = [0, 2, 2], sizes = [1, 16, 16], strides = [1, 1, 1]} : vector<4x18x18xf32> to vector<1x16x16xf32>
    %124 = vector.shape_cast %123 : vector<1x16x16xf32> to vector<16x16xf32>
    %c8 = arith.constant 8 : index
    %125 = memref.load %arg1[%c8] : memref<108xf32, #tpu.memory_space<smem>>
    %126 = vector.broadcast %125 : f32 to vector<16x16xf32>
    %127 = arith.mulf %126, %124 : vector<16x16xf32>
    %128 = arith.addf %114, %127 : vector<16x16xf32>
    %c44 = arith.constant 44 : index
    %129 = memref.load %arg1[%c44] : memref<108xf32, #tpu.memory_space<smem>>
    %130 = vector.broadcast %129 : f32 to vector<16x16xf32>
    %131 = arith.mulf %130, %124 : vector<16x16xf32>
    %132 = arith.addf %118, %131 : vector<16x16xf32>
    %c80 = arith.constant 80 : index
    %133 = memref.load %arg1[%c80] : memref<108xf32, #tpu.memory_space<smem>>
    %134 = vector.broadcast %133 : f32 to vector<16x16xf32>
    %135 = arith.mulf %134, %124 : vector<16x16xf32>
    %136 = arith.addf %122, %135 : vector<16x16xf32>
    %137 = vector.extract_strided_slice %7 {offsets = [1, 0, 0], sizes = [1, 16, 16], strides = [1, 1, 1]} : vector<4x18x18xf32> to vector<1x16x16xf32>
    %138 = vector.shape_cast %137 : vector<1x16x16xf32> to vector<16x16xf32>
    %c9 = arith.constant 9 : index
    %139 = memref.load %arg1[%c9] : memref<108xf32, #tpu.memory_space<smem>>
    %140 = vector.broadcast %139 : f32 to vector<16x16xf32>
    %141 = arith.mulf %140, %138 : vector<16x16xf32>
    %142 = arith.addf %128, %141 : vector<16x16xf32>
    %c45 = arith.constant 45 : index
    %143 = memref.load %arg1[%c45] : memref<108xf32, #tpu.memory_space<smem>>
    %144 = vector.broadcast %143 : f32 to vector<16x16xf32>
    %145 = arith.mulf %144, %138 : vector<16x16xf32>
    %146 = arith.addf %132, %145 : vector<16x16xf32>
    %c81 = arith.constant 81 : index
    %147 = memref.load %arg1[%c81] : memref<108xf32, #tpu.memory_space<smem>>
    %148 = vector.broadcast %147 : f32 to vector<16x16xf32>
    %149 = arith.mulf %148, %138 : vector<16x16xf32>
    %150 = arith.addf %136, %149 : vector<16x16xf32>
    %151 = vector.extract_strided_slice %7 {offsets = [1, 0, 1], sizes = [1, 16, 16], strides = [1, 1, 1]} : vector<4x18x18xf32> to vector<1x16x16xf32>
    %152 = vector.shape_cast %151 : vector<1x16x16xf32> to vector<16x16xf32>
    %c10 = arith.constant 10 : index
    %153 = memref.load %arg1[%c10] : memref<108xf32, #tpu.memory_space<smem>>
    %154 = vector.broadcast %153 : f32 to vector<16x16xf32>
    %155 = arith.mulf %154, %152 : vector<16x16xf32>
    %156 = arith.addf %142, %155 : vector<16x16xf32>
    %c46 = arith.constant 46 : index
    %157 = memref.load %arg1[%c46] : memref<108xf32, #tpu.memory_space<smem>>
    %158 = vector.broadcast %157 : f32 to vector<16x16xf32>
    %159 = arith.mulf %158, %152 : vector<16x16xf32>
    %160 = arith.addf %146, %159 : vector<16x16xf32>
    %c82 = arith.constant 82 : index
    %161 = memref.load %arg1[%c82] : memref<108xf32, #tpu.memory_space<smem>>
    %162 = vector.broadcast %161 : f32 to vector<16x16xf32>
    %163 = arith.mulf %162, %152 : vector<16x16xf32>
    %164 = arith.addf %150, %163 : vector<16x16xf32>
    %165 = vector.extract_strided_slice %7 {offsets = [1, 0, 2], sizes = [1, 16, 16], strides = [1, 1, 1]} : vector<4x18x18xf32> to vector<1x16x16xf32>
    %166 = vector.shape_cast %165 : vector<1x16x16xf32> to vector<16x16xf32>
    %c11 = arith.constant 11 : index
    %167 = memref.load %arg1[%c11] : memref<108xf32, #tpu.memory_space<smem>>
    %168 = vector.broadcast %167 : f32 to vector<16x16xf32>
    %169 = arith.mulf %168, %166 : vector<16x16xf32>
    %170 = arith.addf %156, %169 : vector<16x16xf32>
    %c47 = arith.constant 47 : index
    %171 = memref.load %arg1[%c47] : memref<108xf32, #tpu.memory_space<smem>>
    %172 = vector.broadcast %171 : f32 to vector<16x16xf32>
    %173 = arith.mulf %172, %166 : vector<16x16xf32>
    %174 = arith.addf %160, %173 : vector<16x16xf32>
    %c83 = arith.constant 83 : index
    %175 = memref.load %arg1[%c83] : memref<108xf32, #tpu.memory_space<smem>>
    %176 = vector.broadcast %175 : f32 to vector<16x16xf32>
    %177 = arith.mulf %176, %166 : vector<16x16xf32>
    %178 = arith.addf %164, %177 : vector<16x16xf32>
    %179 = vector.extract_strided_slice %7 {offsets = [1, 1, 0], sizes = [1, 16, 16], strides = [1, 1, 1]} : vector<4x18x18xf32> to vector<1x16x16xf32>
    %180 = vector.shape_cast %179 : vector<1x16x16xf32> to vector<16x16xf32>
    %c12 = arith.constant 12 : index
    %181 = memref.load %arg1[%c12] : memref<108xf32, #tpu.memory_space<smem>>
    %182 = vector.broadcast %181 : f32 to vector<16x16xf32>
    %183 = arith.mulf %182, %180 : vector<16x16xf32>
    %184 = arith.addf %170, %183 : vector<16x16xf32>
    %c48 = arith.constant 48 : index
    %185 = memref.load %arg1[%c48] : memref<108xf32, #tpu.memory_space<smem>>
    %186 = vector.broadcast %185 : f32 to vector<16x16xf32>
    %187 = arith.mulf %186, %180 : vector<16x16xf32>
    %188 = arith.addf %174, %187 : vector<16x16xf32>
    %c84 = arith.constant 84 : index
    %189 = memref.load %arg1[%c84] : memref<108xf32, #tpu.memory_space<smem>>
    %190 = vector.broadcast %189 : f32 to vector<16x16xf32>
    %191 = arith.mulf %190, %180 : vector<16x16xf32>
    %192 = arith.addf %178, %191 : vector<16x16xf32>
    %193 = vector.extract_strided_slice %7 {offsets = [1, 1, 1], sizes = [1, 16, 16], strides = [1, 1, 1]} : vector<4x18x18xf32> to vector<1x16x16xf32>
    %194 = vector.shape_cast %193 : vector<1x16x16xf32> to vector<16x16xf32>
    %c13 = arith.constant 13 : index
    %195 = memref.load %arg1[%c13] : memref<108xf32, #tpu.memory_space<smem>>
    %196 = vector.broadcast %195 : f32 to vector<16x16xf32>
    %197 = arith.mulf %196, %194 : vector<16x16xf32>
    %198 = arith.addf %184, %197 : vector<16x16xf32>
    %c49 = arith.constant 49 : index
    %199 = memref.load %arg1[%c49] : memref<108xf32, #tpu.memory_space<smem>>
    %200 = vector.broadcast %199 : f32 to vector<16x16xf32>
    %201 = arith.mulf %200, %194 : vector<16x16xf32>
    %202 = arith.addf %188, %201 : vector<16x16xf32>
    %c85 = arith.constant 85 : index
    %203 = memref.load %arg1[%c85] : memref<108xf32, #tpu.memory_space<smem>>
    %204 = vector.broadcast %203 : f32 to vector<16x16xf32>
    %205 = arith.mulf %204, %194 : vector<16x16xf32>
    %206 = arith.addf %192, %205 : vector<16x16xf32>
    %207 = vector.extract_strided_slice %7 {offsets = [1, 1, 2], sizes = [1, 16, 16], strides = [1, 1, 1]} : vector<4x18x18xf32> to vector<1x16x16xf32>
    %208 = vector.shape_cast %207 : vector<1x16x16xf32> to vector<16x16xf32>
    %c14 = arith.constant 14 : index
    %209 = memref.load %arg1[%c14] : memref<108xf32, #tpu.memory_space<smem>>
    %210 = vector.broadcast %209 : f32 to vector<16x16xf32>
    %211 = arith.mulf %210, %208 : vector<16x16xf32>
    %212 = arith.addf %198, %211 : vector<16x16xf32>
    %c50 = arith.constant 50 : index
    %213 = memref.load %arg1[%c50] : memref<108xf32, #tpu.memory_space<smem>>
    %214 = vector.broadcast %213 : f32 to vector<16x16xf32>
    %215 = arith.mulf %214, %208 : vector<16x16xf32>
    %216 = arith.addf %202, %215 : vector<16x16xf32>
    %c86 = arith.constant 86 : index
    %217 = memref.load %arg1[%c86] : memref<108xf32, #tpu.memory_space<smem>>
    %218 = vector.broadcast %217 : f32 to vector<16x16xf32>
    %219 = arith.mulf %218, %208 : vector<16x16xf32>
    %220 = arith.addf %206, %219 : vector<16x16xf32>
    %221 = vector.extract_strided_slice %7 {offsets = [1, 2, 0], sizes = [1, 16, 16], strides = [1, 1, 1]} : vector<4x18x18xf32> to vector<1x16x16xf32>
    %222 = vector.shape_cast %221 : vector<1x16x16xf32> to vector<16x16xf32>
    %c15 = arith.constant 15 : index
    %223 = memref.load %arg1[%c15] : memref<108xf32, #tpu.memory_space<smem>>
    %224 = vector.broadcast %223 : f32 to vector<16x16xf32>
    %225 = arith.mulf %224, %222 : vector<16x16xf32>
    %226 = arith.addf %212, %225 : vector<16x16xf32>
    %c51 = arith.constant 51 : index
    %227 = memref.load %arg1[%c51] : memref<108xf32, #tpu.memory_space<smem>>
    %228 = vector.broadcast %227 : f32 to vector<16x16xf32>
    %229 = arith.mulf %228, %222 : vector<16x16xf32>
    %230 = arith.addf %216, %229 : vector<16x16xf32>
    %c87 = arith.constant 87 : index
    %231 = memref.load %arg1[%c87] : memref<108xf32, #tpu.memory_space<smem>>
    %232 = vector.broadcast %231 : f32 to vector<16x16xf32>
    %233 = arith.mulf %232, %222 : vector<16x16xf32>
    %234 = arith.addf %220, %233 : vector<16x16xf32>
    %235 = vector.extract_strided_slice %7 {offsets = [1, 2, 1], sizes = [1, 16, 16], strides = [1, 1, 1]} : vector<4x18x18xf32> to vector<1x16x16xf32>
    %236 = vector.shape_cast %235 : vector<1x16x16xf32> to vector<16x16xf32>
    %c16 = arith.constant 16 : index
    %237 = memref.load %arg1[%c16] : memref<108xf32, #tpu.memory_space<smem>>
    %238 = vector.broadcast %237 : f32 to vector<16x16xf32>
    %239 = arith.mulf %238, %236 : vector<16x16xf32>
    %240 = arith.addf %226, %239 : vector<16x16xf32>
    %c52 = arith.constant 52 : index
    %241 = memref.load %arg1[%c52] : memref<108xf32, #tpu.memory_space<smem>>
    %242 = vector.broadcast %241 : f32 to vector<16x16xf32>
    %243 = arith.mulf %242, %236 : vector<16x16xf32>
    %244 = arith.addf %230, %243 : vector<16x16xf32>
    %c88 = arith.constant 88 : index
    %245 = memref.load %arg1[%c88] : memref<108xf32, #tpu.memory_space<smem>>
    %246 = vector.broadcast %245 : f32 to vector<16x16xf32>
    %247 = arith.mulf %246, %236 : vector<16x16xf32>
    %248 = arith.addf %234, %247 : vector<16x16xf32>
    %249 = vector.extract_strided_slice %7 {offsets = [1, 2, 2], sizes = [1, 16, 16], strides = [1, 1, 1]} : vector<4x18x18xf32> to vector<1x16x16xf32>
    %250 = vector.shape_cast %249 : vector<1x16x16xf32> to vector<16x16xf32>
    %c17 = arith.constant 17 : index
    %251 = memref.load %arg1[%c17] : memref<108xf32, #tpu.memory_space<smem>>
    %252 = vector.broadcast %251 : f32 to vector<16x16xf32>
    %253 = arith.mulf %252, %250 : vector<16x16xf32>
    %254 = arith.addf %240, %253 : vector<16x16xf32>
    %c53 = arith.constant 53 : index
    %255 = memref.load %arg1[%c53] : memref<108xf32, #tpu.memory_space<smem>>
    %256 = vector.broadcast %255 : f32 to vector<16x16xf32>
    %257 = arith.mulf %256, %250 : vector<16x16xf32>
    %258 = arith.addf %244, %257 : vector<16x16xf32>
    %c89 = arith.constant 89 : index
    %259 = memref.load %arg1[%c89] : memref<108xf32, #tpu.memory_space<smem>>
    %260 = vector.broadcast %259 : f32 to vector<16x16xf32>
    %261 = arith.mulf %260, %250 : vector<16x16xf32>
    %262 = arith.addf %248, %261 : vector<16x16xf32>
    %263 = vector.extract_strided_slice %7 {offsets = [2, 0, 0], sizes = [1, 16, 16], strides = [1, 1, 1]} : vector<4x18x18xf32> to vector<1x16x16xf32>
    %264 = vector.shape_cast %263 : vector<1x16x16xf32> to vector<16x16xf32>
    %c18 = arith.constant 18 : index
    %265 = memref.load %arg1[%c18] : memref<108xf32, #tpu.memory_space<smem>>
    %266 = vector.broadcast %265 : f32 to vector<16x16xf32>
    %267 = arith.mulf %266, %264 : vector<16x16xf32>
    %268 = arith.addf %254, %267 : vector<16x16xf32>
    %c54 = arith.constant 54 : index
    %269 = memref.load %arg1[%c54] : memref<108xf32, #tpu.memory_space<smem>>
    %270 = vector.broadcast %269 : f32 to vector<16x16xf32>
    %271 = arith.mulf %270, %264 : vector<16x16xf32>
    %272 = arith.addf %258, %271 : vector<16x16xf32>
    %c90 = arith.constant 90 : index
    %273 = memref.load %arg1[%c90] : memref<108xf32, #tpu.memory_space<smem>>
    %274 = vector.broadcast %273 : f32 to vector<16x16xf32>
    %275 = arith.mulf %274, %264 : vector<16x16xf32>
    %276 = arith.addf %262, %275 : vector<16x16xf32>
    %277 = vector.extract_strided_slice %7 {offsets = [2, 0, 1], sizes = [1, 16, 16], strides = [1, 1, 1]} : vector<4x18x18xf32> to vector<1x16x16xf32>
    %278 = vector.shape_cast %277 : vector<1x16x16xf32> to vector<16x16xf32>
    %c19 = arith.constant 19 : index
    %279 = memref.load %arg1[%c19] : memref<108xf32, #tpu.memory_space<smem>>
    %280 = vector.broadcast %279 : f32 to vector<16x16xf32>
    %281 = arith.mulf %280, %278 : vector<16x16xf32>
    %282 = arith.addf %268, %281 : vector<16x16xf32>
    %c55 = arith.constant 55 : index
    %283 = memref.load %arg1[%c55] : memref<108xf32, #tpu.memory_space<smem>>
    %284 = vector.broadcast %283 : f32 to vector<16x16xf32>
    %285 = arith.mulf %284, %278 : vector<16x16xf32>
    %286 = arith.addf %272, %285 : vector<16x16xf32>
    %c91 = arith.constant 91 : index
    %287 = memref.load %arg1[%c91] : memref<108xf32, #tpu.memory_space<smem>>
    %288 = vector.broadcast %287 : f32 to vector<16x16xf32>
    %289 = arith.mulf %288, %278 : vector<16x16xf32>
    %290 = arith.addf %276, %289 : vector<16x16xf32>
    %291 = vector.extract_strided_slice %7 {offsets = [2, 0, 2], sizes = [1, 16, 16], strides = [1, 1, 1]} : vector<4x18x18xf32> to vector<1x16x16xf32>
    %292 = vector.shape_cast %291 : vector<1x16x16xf32> to vector<16x16xf32>
    %c20 = arith.constant 20 : index
    %293 = memref.load %arg1[%c20] : memref<108xf32, #tpu.memory_space<smem>>
    %294 = vector.broadcast %293 : f32 to vector<16x16xf32>
    %295 = arith.mulf %294, %292 : vector<16x16xf32>
    %296 = arith.addf %282, %295 : vector<16x16xf32>
    %c56 = arith.constant 56 : index
    %297 = memref.load %arg1[%c56] : memref<108xf32, #tpu.memory_space<smem>>
    %298 = vector.broadcast %297 : f32 to vector<16x16xf32>
    %299 = arith.mulf %298, %292 : vector<16x16xf32>
    %300 = arith.addf %286, %299 : vector<16x16xf32>
    %c92 = arith.constant 92 : index
    %301 = memref.load %arg1[%c92] : memref<108xf32, #tpu.memory_space<smem>>
    %302 = vector.broadcast %301 : f32 to vector<16x16xf32>
    %303 = arith.mulf %302, %292 : vector<16x16xf32>
    %304 = arith.addf %290, %303 : vector<16x16xf32>
    %305 = vector.extract_strided_slice %7 {offsets = [2, 1, 0], sizes = [1, 16, 16], strides = [1, 1, 1]} : vector<4x18x18xf32> to vector<1x16x16xf32>
    %306 = vector.shape_cast %305 : vector<1x16x16xf32> to vector<16x16xf32>
    %c21 = arith.constant 21 : index
    %307 = memref.load %arg1[%c21] : memref<108xf32, #tpu.memory_space<smem>>
    %308 = vector.broadcast %307 : f32 to vector<16x16xf32>
    %309 = arith.mulf %308, %306 : vector<16x16xf32>
    %310 = arith.addf %296, %309 : vector<16x16xf32>
    %c57 = arith.constant 57 : index
    %311 = memref.load %arg1[%c57] : memref<108xf32, #tpu.memory_space<smem>>
    %312 = vector.broadcast %311 : f32 to vector<16x16xf32>
    %313 = arith.mulf %312, %306 : vector<16x16xf32>
    %314 = arith.addf %300, %313 : vector<16x16xf32>
    %c93 = arith.constant 93 : index
    %315 = memref.load %arg1[%c93] : memref<108xf32, #tpu.memory_space<smem>>
    %316 = vector.broadcast %315 : f32 to vector<16x16xf32>
    %317 = arith.mulf %316, %306 : vector<16x16xf32>
    %318 = arith.addf %304, %317 : vector<16x16xf32>
    %319 = vector.extract_strided_slice %7 {offsets = [2, 1, 1], sizes = [1, 16, 16], strides = [1, 1, 1]} : vector<4x18x18xf32> to vector<1x16x16xf32>
    %320 = vector.shape_cast %319 : vector<1x16x16xf32> to vector<16x16xf32>
    %c22 = arith.constant 22 : index
    %321 = memref.load %arg1[%c22] : memref<108xf32, #tpu.memory_space<smem>>
    %322 = vector.broadcast %321 : f32 to vector<16x16xf32>
    %323 = arith.mulf %322, %320 : vector<16x16xf32>
    %324 = arith.addf %310, %323 : vector<16x16xf32>
    %c58 = arith.constant 58 : index
    %325 = memref.load %arg1[%c58] : memref<108xf32, #tpu.memory_space<smem>>
    %326 = vector.broadcast %325 : f32 to vector<16x16xf32>
    %327 = arith.mulf %326, %320 : vector<16x16xf32>
    %328 = arith.addf %314, %327 : vector<16x16xf32>
    %c94 = arith.constant 94 : index
    %329 = memref.load %arg1[%c94] : memref<108xf32, #tpu.memory_space<smem>>
    %330 = vector.broadcast %329 : f32 to vector<16x16xf32>
    %331 = arith.mulf %330, %320 : vector<16x16xf32>
    %332 = arith.addf %318, %331 : vector<16x16xf32>
    %333 = vector.extract_strided_slice %7 {offsets = [2, 1, 2], sizes = [1, 16, 16], strides = [1, 1, 1]} : vector<4x18x18xf32> to vector<1x16x16xf32>
    %334 = vector.shape_cast %333 : vector<1x16x16xf32> to vector<16x16xf32>
    %c23 = arith.constant 23 : index
    %335 = memref.load %arg1[%c23] : memref<108xf32, #tpu.memory_space<smem>>
    %336 = vector.broadcast %335 : f32 to vector<16x16xf32>
    %337 = arith.mulf %336, %334 : vector<16x16xf32>
    %338 = arith.addf %324, %337 : vector<16x16xf32>
    %c59 = arith.constant 59 : index
    %339 = memref.load %arg1[%c59] : memref<108xf32, #tpu.memory_space<smem>>
    %340 = vector.broadcast %339 : f32 to vector<16x16xf32>
    %341 = arith.mulf %340, %334 : vector<16x16xf32>
    %342 = arith.addf %328, %341 : vector<16x16xf32>
    %c95 = arith.constant 95 : index
    %343 = memref.load %arg1[%c95] : memref<108xf32, #tpu.memory_space<smem>>
    %344 = vector.broadcast %343 : f32 to vector<16x16xf32>
    %345 = arith.mulf %344, %334 : vector<16x16xf32>
    %346 = arith.addf %332, %345 : vector<16x16xf32>
    %347 = vector.extract_strided_slice %7 {offsets = [2, 2, 0], sizes = [1, 16, 16], strides = [1, 1, 1]} : vector<4x18x18xf32> to vector<1x16x16xf32>
    %348 = vector.shape_cast %347 : vector<1x16x16xf32> to vector<16x16xf32>
    %c24 = arith.constant 24 : index
    %349 = memref.load %arg1[%c24] : memref<108xf32, #tpu.memory_space<smem>>
    %350 = vector.broadcast %349 : f32 to vector<16x16xf32>
    %351 = arith.mulf %350, %348 : vector<16x16xf32>
    %352 = arith.addf %338, %351 : vector<16x16xf32>
    %c60 = arith.constant 60 : index
    %353 = memref.load %arg1[%c60] : memref<108xf32, #tpu.memory_space<smem>>
    %354 = vector.broadcast %353 : f32 to vector<16x16xf32>
    %355 = arith.mulf %354, %348 : vector<16x16xf32>
    %356 = arith.addf %342, %355 : vector<16x16xf32>
    %c96 = arith.constant 96 : index
    %357 = memref.load %arg1[%c96] : memref<108xf32, #tpu.memory_space<smem>>
    %358 = vector.broadcast %357 : f32 to vector<16x16xf32>
    %359 = arith.mulf %358, %348 : vector<16x16xf32>
    %360 = arith.addf %346, %359 : vector<16x16xf32>
    %361 = vector.extract_strided_slice %7 {offsets = [2, 2, 1], sizes = [1, 16, 16], strides = [1, 1, 1]} : vector<4x18x18xf32> to vector<1x16x16xf32>
    %362 = vector.shape_cast %361 : vector<1x16x16xf32> to vector<16x16xf32>
    %c25 = arith.constant 25 : index
    %363 = memref.load %arg1[%c25] : memref<108xf32, #tpu.memory_space<smem>>
    %364 = vector.broadcast %363 : f32 to vector<16x16xf32>
    %365 = arith.mulf %364, %362 : vector<16x16xf32>
    %366 = arith.addf %352, %365 : vector<16x16xf32>
    %c61 = arith.constant 61 : index
    %367 = memref.load %arg1[%c61] : memref<108xf32, #tpu.memory_space<smem>>
    %368 = vector.broadcast %367 : f32 to vector<16x16xf32>
    %369 = arith.mulf %368, %362 : vector<16x16xf32>
    %370 = arith.addf %356, %369 : vector<16x16xf32>
    %c97 = arith.constant 97 : index
    %371 = memref.load %arg1[%c97] : memref<108xf32, #tpu.memory_space<smem>>
    %372 = vector.broadcast %371 : f32 to vector<16x16xf32>
    %373 = arith.mulf %372, %362 : vector<16x16xf32>
    %374 = arith.addf %360, %373 : vector<16x16xf32>
    %375 = vector.extract_strided_slice %7 {offsets = [2, 2, 2], sizes = [1, 16, 16], strides = [1, 1, 1]} : vector<4x18x18xf32> to vector<1x16x16xf32>
    %376 = vector.shape_cast %375 : vector<1x16x16xf32> to vector<16x16xf32>
    %c26 = arith.constant 26 : index
    %377 = memref.load %arg1[%c26] : memref<108xf32, #tpu.memory_space<smem>>
    %378 = vector.broadcast %377 : f32 to vector<16x16xf32>
    %379 = arith.mulf %378, %376 : vector<16x16xf32>
    %380 = arith.addf %366, %379 : vector<16x16xf32>
    %c62 = arith.constant 62 : index
    %381 = memref.load %arg1[%c62] : memref<108xf32, #tpu.memory_space<smem>>
    %382 = vector.broadcast %381 : f32 to vector<16x16xf32>
    %383 = arith.mulf %382, %376 : vector<16x16xf32>
    %384 = arith.addf %370, %383 : vector<16x16xf32>
    %c98 = arith.constant 98 : index
    %385 = memref.load %arg1[%c98] : memref<108xf32, #tpu.memory_space<smem>>
    %386 = vector.broadcast %385 : f32 to vector<16x16xf32>
    %387 = arith.mulf %386, %376 : vector<16x16xf32>
    %388 = arith.addf %374, %387 : vector<16x16xf32>
    %389 = vector.extract_strided_slice %7 {offsets = [3, 0, 0], sizes = [1, 16, 16], strides = [1, 1, 1]} : vector<4x18x18xf32> to vector<1x16x16xf32>
    %390 = vector.shape_cast %389 : vector<1x16x16xf32> to vector<16x16xf32>
    %c27 = arith.constant 27 : index
    %391 = memref.load %arg1[%c27] : memref<108xf32, #tpu.memory_space<smem>>
    %392 = vector.broadcast %391 : f32 to vector<16x16xf32>
    %393 = arith.mulf %392, %390 : vector<16x16xf32>
    %394 = arith.addf %380, %393 : vector<16x16xf32>
    %c63 = arith.constant 63 : index
    %395 = memref.load %arg1[%c63] : memref<108xf32, #tpu.memory_space<smem>>
    %396 = vector.broadcast %395 : f32 to vector<16x16xf32>
    %397 = arith.mulf %396, %390 : vector<16x16xf32>
    %398 = arith.addf %384, %397 : vector<16x16xf32>
    %c99 = arith.constant 99 : index
    %399 = memref.load %arg1[%c99] : memref<108xf32, #tpu.memory_space<smem>>
    %400 = vector.broadcast %399 : f32 to vector<16x16xf32>
    %401 = arith.mulf %400, %390 : vector<16x16xf32>
    %402 = arith.addf %388, %401 : vector<16x16xf32>
    %403 = vector.extract_strided_slice %7 {offsets = [3, 0, 1], sizes = [1, 16, 16], strides = [1, 1, 1]} : vector<4x18x18xf32> to vector<1x16x16xf32>
    %404 = vector.shape_cast %403 : vector<1x16x16xf32> to vector<16x16xf32>
    %c28 = arith.constant 28 : index
    %405 = memref.load %arg1[%c28] : memref<108xf32, #tpu.memory_space<smem>>
    %406 = vector.broadcast %405 : f32 to vector<16x16xf32>
    %407 = arith.mulf %406, %404 : vector<16x16xf32>
    %408 = arith.addf %394, %407 : vector<16x16xf32>
    %c64 = arith.constant 64 : index
    %409 = memref.load %arg1[%c64] : memref<108xf32, #tpu.memory_space<smem>>
    %410 = vector.broadcast %409 : f32 to vector<16x16xf32>
    %411 = arith.mulf %410, %404 : vector<16x16xf32>
    %412 = arith.addf %398, %411 : vector<16x16xf32>
    %c100 = arith.constant 100 : index
    %413 = memref.load %arg1[%c100] : memref<108xf32, #tpu.memory_space<smem>>
    %414 = vector.broadcast %413 : f32 to vector<16x16xf32>
    %415 = arith.mulf %414, %404 : vector<16x16xf32>
    %416 = arith.addf %402, %415 : vector<16x16xf32>
    %417 = vector.extract_strided_slice %7 {offsets = [3, 0, 2], sizes = [1, 16, 16], strides = [1, 1, 1]} : vector<4x18x18xf32> to vector<1x16x16xf32>
    %418 = vector.shape_cast %417 : vector<1x16x16xf32> to vector<16x16xf32>
    %c29 = arith.constant 29 : index
    %419 = memref.load %arg1[%c29] : memref<108xf32, #tpu.memory_space<smem>>
    %420 = vector.broadcast %419 : f32 to vector<16x16xf32>
    %421 = arith.mulf %420, %418 : vector<16x16xf32>
    %422 = arith.addf %408, %421 : vector<16x16xf32>
    %c65 = arith.constant 65 : index
    %423 = memref.load %arg1[%c65] : memref<108xf32, #tpu.memory_space<smem>>
    %424 = vector.broadcast %423 : f32 to vector<16x16xf32>
    %425 = arith.mulf %424, %418 : vector<16x16xf32>
    %426 = arith.addf %412, %425 : vector<16x16xf32>
    %c101 = arith.constant 101 : index
    %427 = memref.load %arg1[%c101] : memref<108xf32, #tpu.memory_space<smem>>
    %428 = vector.broadcast %427 : f32 to vector<16x16xf32>
    %429 = arith.mulf %428, %418 : vector<16x16xf32>
    %430 = arith.addf %416, %429 : vector<16x16xf32>
    %431 = vector.extract_strided_slice %7 {offsets = [3, 1, 0], sizes = [1, 16, 16], strides = [1, 1, 1]} : vector<4x18x18xf32> to vector<1x16x16xf32>
    %432 = vector.shape_cast %431 : vector<1x16x16xf32> to vector<16x16xf32>
    %c30 = arith.constant 30 : index
    %433 = memref.load %arg1[%c30] : memref<108xf32, #tpu.memory_space<smem>>
    %434 = vector.broadcast %433 : f32 to vector<16x16xf32>
    %435 = arith.mulf %434, %432 : vector<16x16xf32>
    %436 = arith.addf %422, %435 : vector<16x16xf32>
    %c66 = arith.constant 66 : index
    %437 = memref.load %arg1[%c66] : memref<108xf32, #tpu.memory_space<smem>>
    %438 = vector.broadcast %437 : f32 to vector<16x16xf32>
    %439 = arith.mulf %438, %432 : vector<16x16xf32>
    %440 = arith.addf %426, %439 : vector<16x16xf32>
    %c102 = arith.constant 102 : index
    %441 = memref.load %arg1[%c102] : memref<108xf32, #tpu.memory_space<smem>>
    %442 = vector.broadcast %441 : f32 to vector<16x16xf32>
    %443 = arith.mulf %442, %432 : vector<16x16xf32>
    %444 = arith.addf %430, %443 : vector<16x16xf32>
    %445 = vector.extract_strided_slice %7 {offsets = [3, 1, 1], sizes = [1, 16, 16], strides = [1, 1, 1]} : vector<4x18x18xf32> to vector<1x16x16xf32>
    %446 = vector.shape_cast %445 : vector<1x16x16xf32> to vector<16x16xf32>
    %c31 = arith.constant 31 : index
    %447 = memref.load %arg1[%c31] : memref<108xf32, #tpu.memory_space<smem>>
    %448 = vector.broadcast %447 : f32 to vector<16x16xf32>
    %449 = arith.mulf %448, %446 : vector<16x16xf32>
    %450 = arith.addf %436, %449 : vector<16x16xf32>
    %c67 = arith.constant 67 : index
    %451 = memref.load %arg1[%c67] : memref<108xf32, #tpu.memory_space<smem>>
    %452 = vector.broadcast %451 : f32 to vector<16x16xf32>
    %453 = arith.mulf %452, %446 : vector<16x16xf32>
    %454 = arith.addf %440, %453 : vector<16x16xf32>
    %c103 = arith.constant 103 : index
    %455 = memref.load %arg1[%c103] : memref<108xf32, #tpu.memory_space<smem>>
    %456 = vector.broadcast %455 : f32 to vector<16x16xf32>
    %457 = arith.mulf %456, %446 : vector<16x16xf32>
    %458 = arith.addf %444, %457 : vector<16x16xf32>
    %459 = vector.extract_strided_slice %7 {offsets = [3, 1, 2], sizes = [1, 16, 16], strides = [1, 1, 1]} : vector<4x18x18xf32> to vector<1x16x16xf32>
    %460 = vector.shape_cast %459 : vector<1x16x16xf32> to vector<16x16xf32>
    %c32 = arith.constant 32 : index
    %461 = memref.load %arg1[%c32] : memref<108xf32, #tpu.memory_space<smem>>
    %462 = vector.broadcast %461 : f32 to vector<16x16xf32>
    %463 = arith.mulf %462, %460 : vector<16x16xf32>
    %464 = arith.addf %450, %463 : vector<16x16xf32>
    %c68 = arith.constant 68 : index
    %465 = memref.load %arg1[%c68] : memref<108xf32, #tpu.memory_space<smem>>
    %466 = vector.broadcast %465 : f32 to vector<16x16xf32>
    %467 = arith.mulf %466, %460 : vector<16x16xf32>
    %468 = arith.addf %454, %467 : vector<16x16xf32>
    %c104 = arith.constant 104 : index
    %469 = memref.load %arg1[%c104] : memref<108xf32, #tpu.memory_space<smem>>
    %470 = vector.broadcast %469 : f32 to vector<16x16xf32>
    %471 = arith.mulf %470, %460 : vector<16x16xf32>
    %472 = arith.addf %458, %471 : vector<16x16xf32>
    %473 = vector.extract_strided_slice %7 {offsets = [3, 2, 0], sizes = [1, 16, 16], strides = [1, 1, 1]} : vector<4x18x18xf32> to vector<1x16x16xf32>
    %474 = vector.shape_cast %473 : vector<1x16x16xf32> to vector<16x16xf32>
    %c33 = arith.constant 33 : index
    %475 = memref.load %arg1[%c33] : memref<108xf32, #tpu.memory_space<smem>>
    %476 = vector.broadcast %475 : f32 to vector<16x16xf32>
    %477 = arith.mulf %476, %474 : vector<16x16xf32>
    %478 = arith.addf %464, %477 : vector<16x16xf32>
    %c69 = arith.constant 69 : index
    %479 = memref.load %arg1[%c69] : memref<108xf32, #tpu.memory_space<smem>>
    %480 = vector.broadcast %479 : f32 to vector<16x16xf32>
    %481 = arith.mulf %480, %474 : vector<16x16xf32>
    %482 = arith.addf %468, %481 : vector<16x16xf32>
    %c105 = arith.constant 105 : index
    %483 = memref.load %arg1[%c105] : memref<108xf32, #tpu.memory_space<smem>>
    %484 = vector.broadcast %483 : f32 to vector<16x16xf32>
    %485 = arith.mulf %484, %474 : vector<16x16xf32>
    %486 = arith.addf %472, %485 : vector<16x16xf32>
    %487 = vector.extract_strided_slice %7 {offsets = [3, 2, 1], sizes = [1, 16, 16], strides = [1, 1, 1]} : vector<4x18x18xf32> to vector<1x16x16xf32>
    %488 = vector.shape_cast %487 : vector<1x16x16xf32> to vector<16x16xf32>
    %c34 = arith.constant 34 : index
    %489 = memref.load %arg1[%c34] : memref<108xf32, #tpu.memory_space<smem>>
    %490 = vector.broadcast %489 : f32 to vector<16x16xf32>
    %491 = arith.mulf %490, %488 : vector<16x16xf32>
    %492 = arith.addf %478, %491 : vector<16x16xf32>
    %c70 = arith.constant 70 : index
    %493 = memref.load %arg1[%c70] : memref<108xf32, #tpu.memory_space<smem>>
    %494 = vector.broadcast %493 : f32 to vector<16x16xf32>
    %495 = arith.mulf %494, %488 : vector<16x16xf32>
    %496 = arith.addf %482, %495 : vector<16x16xf32>
    %c106 = arith.constant 106 : index
    %497 = memref.load %arg1[%c106] : memref<108xf32, #tpu.memory_space<smem>>
    %498 = vector.broadcast %497 : f32 to vector<16x16xf32>
    %499 = arith.mulf %498, %488 : vector<16x16xf32>
    %500 = arith.addf %486, %499 : vector<16x16xf32>
    %501 = vector.extract_strided_slice %7 {offsets = [3, 2, 2], sizes = [1, 16, 16], strides = [1, 1, 1]} : vector<4x18x18xf32> to vector<1x16x16xf32>
    %502 = vector.shape_cast %501 : vector<1x16x16xf32> to vector<16x16xf32>
    %c35 = arith.constant 35 : index
    %503 = memref.load %arg1[%c35] : memref<108xf32, #tpu.memory_space<smem>>
    %504 = vector.broadcast %503 : f32 to vector<16x16xf32>
    %505 = arith.mulf %504, %502 : vector<16x16xf32>
    %506 = arith.addf %492, %505 : vector<16x16xf32>
    %c71 = arith.constant 71 : index
    %507 = memref.load %arg1[%c71] : memref<108xf32, #tpu.memory_space<smem>>
    %508 = vector.broadcast %507 : f32 to vector<16x16xf32>
    %509 = arith.mulf %508, %502 : vector<16x16xf32>
    %510 = arith.addf %496, %509 : vector<16x16xf32>
    %c107 = arith.constant 107 : index
    %511 = memref.load %arg1[%c107] : memref<108xf32, #tpu.memory_space<smem>>
    %512 = vector.broadcast %511 : f32 to vector<16x16xf32>
    %513 = arith.mulf %512, %502 : vector<16x16xf32>
    %514 = arith.addf %500, %513 : vector<16x16xf32>
    %c0_6 = arith.constant 0 : index
    %515 = memref.load %arg2[%c0_6] : memref<3xf32, #tpu.memory_space<smem>>
    %516 = vector.broadcast %515 : f32 to vector<16x16xf32>
    %517 = arith.addf %506, %516 : vector<16x16xf32>
    %518 = math.tanh %517 : vector<16x16xf32>
    %c0_7 = arith.constant 0 : index
    %c0_8 = arith.constant 0 : index
    %c0_9 = arith.constant 0 : index
    %c0_10 = arith.constant 0 : index
    %519 = vector.load %arg4[%c0_7, %c0_8, %c0_9, %c0_10] : memref<1x3x16x16xf32, #tpu.memory_space<vmem>>, vector<1x1x16x16xf32>
    %520 = vector.shape_cast %519 : vector<1x1x16x16xf32> to vector<16x16xf32>
    %521 = vector.shape_cast %518 : vector<16x16xf32> to vector<1x1x16x16xf32>
    tpu.vector_store %arg4[%c0_7, %c0_8, %c0_9, %c0_10], %521 {strides = array<i32>} : memref<1x3x16x16xf32, #tpu.memory_space<vmem>>, vector<1x1x16x16xf32>,
    %c1_11 = arith.constant 1 : index
    %522 = memref.load %arg2[%c1_11] : memref<3xf32, #tpu.memory_space<smem>>
    %523 = vector.broadcast %522 : f32 to vector<16x16xf32>
    %524 = arith.addf %510, %523 : vector<16x16xf32>
    %525 = math.tanh %524 : vector<16x16xf32>
    %c0_12 = arith.constant 0 : index
    %c1_13 = arith.constant 1 : index
    %c0_14 = arith.constant 0 : index
    %c0_15 = arith.constant 0 : index
    %526 = vector.load %arg4[%c0_12, %c1_13, %c0_14, %c0_15] : memref<1x3x16x16xf32, #tpu.memory_space<vmem>>, vector<1x1x16x16xf32>
    %527 = vector.shape_cast %526 : vector<1x1x16x16xf32> to vector<16x16xf32>
    %528 = vector.shape_cast %525 : vector<16x16xf32> to vector<1x1x16x16xf32>
    tpu.vector_store %arg4[%c0_12, %c1_13, %c0_14, %c0_15], %528 {strides = array<i32>} : memref<1x3x16x16xf32, #tpu.memory_space<vmem>>, vector<1x1x16x16xf32>,
    %c2_16 = arith.constant 2 : index
    %529 = memref.load %arg2[%c2_16] : memref<3xf32, #tpu.memory_space<smem>>
    %530 = vector.broadcast %529 : f32 to vector<16x16xf32>
    %531 = arith.addf %514, %530 : vector<16x16xf32>
    %532 = math.tanh %531 : vector<16x16xf32>
    %c0_17 = arith.constant 0 : index
    %c2_18 = arith.constant 2 : index
    %c0_19 = arith.constant 0 : index
    %c0_20 = arith.constant 0 : index
    %533 = vector.load %arg4[%c0_17, %c2_18, %c0_19, %c0_20] : memref<1x3x16x16xf32, #tpu.memory_space<vmem>>, vector<1x1x16x16xf32>
    %534 = vector.shape_cast %533 : vector<1x1x16x16xf32> to vector<16x16xf32>
    %535 = vector.shape_cast %532 : vector<16x16xf32> to vector<1x1x16x16xf32>
    tpu.vector_store %arg4[%c0_17, %c2_18, %c0_19, %c0_20], %535 {strides = array<i32>} : memref<1x3x16x16xf32, #tpu.memory_space<vmem>>, vector<1x1x16x16xf32>,
    return
  }
  func.func @transform_0(%arg0: i32) -> i32 {
    %c0_i32 = arith.constant 0 : i32
    %c0_i32_0 = arith.constant 0 : i32
    return %c0_i32 : i32
  }
  func.func @transform_1(%arg0: i32) -> i32 {
    %c0_i32 = arith.constant 0 : i32
    %c0_i32_0 = arith.constant 0 : i32
    return %c0_i32 : i32
  }
  func.func @transform_2(%arg0: i32) -> (i32, i32, i32, i32) {
    %c0_i32 = arith.constant 0 : i32
    %c0_i32_0 = arith.constant 0 : i32
    %c0_i32_1 = arith.constant 0 : i32
    %c0_i32_2 = arith.constant 0 : i32
    return %arg0, %c0_i32, %c0_i32_0, %c0_i32_1 : i32, i32, i32, i32
  }
  func.func @transform_3(%arg0: i32) -> (i32, i32, i32, i32) {
    %c0_i32 = arith.constant 0 : i32
    %c0_i32_0 = arith.constant 0 : i32
    %c0_i32_1 = arith.constant 0 : i32
    %c0_i32_2 = arith.constant 0 : i32
    return %arg0, %c0_i32, %c0_i32_0, %c0_i32_1 : i32, i32, i32, i32
  }
}

</mosaic_0001>

<llo_original>
// kernel: get_image_forward.1
$region0: #{get_image_forward.1}
  #allocation0 [shape = 'u32[]', space=smem, size = 0x4, offset = 0x4, fixed_abs, tag = 'smem constant byte address 0x4 - core index']
  #allocation1 [shape = 'u32[72,128]{1,0:T(1,128)}', space=vmem, size = 0x9000, scoped, tag = 'internal scratch']
  %s0 = inlined_call_operand.vmem [shape: f32[108], index: 0, kind: input, shape index: {}]
  %s1 = inlined_call_operand.vmem [shape: f32[3], index: 1, kind: input, shape index: {}]
  %s2 = inlined_call_operand.vmem [shape: f32[2,4,16,16], index: 2, kind: input, shape index: {}]
  %s3 = inlined_call_operand.hbm [shape: f32[2,3,16,16], index: 3, kind: output, shape index: {}]
  %s4 = sld [smem:[#allocation0]]
  $region53: #{get_image_forward.1} parent=0
    _
  %s6 = ssub.s32 1, %s4
  %s7 = scalar_select 0, %s6, %s4
  $region1: #{get_image_forward.1} parent=0
    #allocation2 [shape = 'u8[512]{0}', space=smem, size = 0x200, scoped, tag = 'input window, operand 0, single buffered']
    #allocation3 [shape = 's32[2]{0}', space=sflag, size = 0x8, scoped, tag = 'scoped memory for get_image_forward.1']
    #allocation4 [shape = 's32[2]{0}', space=sflag, size = 0x8, scoped, tag = 'scoped memory for get_image_forward.1']
    #allocation5 [shape = 'u8[512]{0}', space=smem, size = 0x200, scoped, tag = 'input window, operand 1, single buffered']
    #allocation6 [shape = 's32[1]{0}', space=sflag, size = 0x4, scoped, tag = 'scoped memory for get_image_forward.1']
    #allocation7 [shape = 'u8[49152]{0}', space=vmem, size = 0xc000, scoped, tag = 'output window, operand 0']
    %8 = vsyncpa [#allocation4], 0
    %9 = vsyncpa [#allocation6], 0
    %10 = vsyncpa [#allocation3], 0
    %s11 = scalar_lea.sflag [#allocation3], 1
    %12 = vsyncpa %s11, 0
    loop: start=0, step=1, limit=4
    $region2: #{get_image_forward.1} parent=1 // loop_pre_header
      _
    $region3: #{get_image_forward.1} parent=1 // loop_header
      %s14 = sphi 0, %s18
      %p15 = scmp.ge.s32.totalorder %s14, 4
      %s22 = sphi 0, %s22
      %s24 = sphi 0, %s22
      %s25 = sphi 0, %s24
      %s39 = sphi 0, %s25
      %s43 = sphi 0, %s43
      %s45 = sphi 0, %s43
      %s46 = sphi 0, %s45
      %s60 = sphi 0, %s46
      %s66 = sphi 0, %s68
      %s69 = sphi 0, %s66
      %s70 = sphi 0, %s69
      %s86 = sphi 0, %s70
      %s92 = sphi 0, %s94
      %s95 = sphi 0, %s92
      %s96 = sphi 0, %s95
      %s112 = sphi 0, %s96
    $region4: #{get_image_forward.1} parent=1 // loop_header_branch
      %17 = sbr.rel (%p15) target = $region8
    $region5: #{get_image_forward.1} parent=1 // loop_body
      %s19 = ssub.s32 %s14, 1
      %s20 = ssub.s32 %s14, 2
      %s21 = sadd.s32 %s14, 1
      %s23 = sadd.s32 %s22, 1
      %p26 = scmp.eq.s32.totalorder %s14, 1
      %p27 = scmp.ne.s32.totalorder %s22, %s24
      %p28 = scmp.eq.s32.totalorder %s14, 0
      %p29 = por %p27, %p28
      %p30 = scmp.ne.s32.totalorder %s22, %s24
      %p31 = scmp.eq.s32.totalorder %s19, 1
      %p32 = por %p30, %p31
      %p33 = scmp.ne.s32.totalorder %s24, %s25
      %p34 = scmp.eq.s32.totalorder %s19, 0
      %p35 = por %p33, %p34
      %p36 = scmp.ne.s32.totalorder %s24, %s25
      %p37 = scmp.eq.s32.totalorder %s20, 1
      %p38 = por %p36, %p37
      %p40 = scmp.ne.s32.totalorder %s25, %s39
      %p41 = scmp.eq.s32.totalorder %s20, 0
      %p42 = por %p40, %p41
      %s44 = sadd.s32 %s43, 1
      %p47 = scmp.eq.s32.totalorder %s14, 1
      %p48 = scmp.ne.s32.totalorder %s43, %s45
      %p49 = scmp.eq.s32.totalorder %s14, 0
      %p50 = por %p48, %p49
      %p51 = scmp.ne.s32.totalorder %s43, %s45
      %p52 = scmp.eq.s32.totalorder %s19, 1
      %p53 = por %p51, %p52
      %p54 = scmp.ne.s32.totalorder %s45, %s46
      %p55 = scmp.eq.s32.totalorder %s19, 0
      %p56 = por %p54, %p55
      %p57 = scmp.ne.s32.totalorder %s45, %s46
      %p58 = scmp.eq.s32.totalorder %s20, 1
      %p59 = por %p57, %p58
      %p61 = scmp.ne.s32.totalorder %s46, %s60
      %p62 = scmp.eq.s32.totalorder %s20, 0
      %p63 = por %p61, %p62
      %s64 = ssub.s32 %s14, %s21
      %p65 = scmp.eq.s32.totalorder %s64, 0
      %s67 = sadd.s32 %s66, 1
      %s68 = scalar_select %p65, %s66, %s67
      %p71 = pneg %p65
      %p72 = scmp.eq.s32.totalorder %s14, 1
      %p73 = por %p71, %p72
      %p74 = scmp.ne.s32.totalorder %s66, %s69
      %p75 = scmp.eq.s32.totalorder %s14, 0
      %p76 = por %p74, %p75
      %p77 = scmp.ne.s32.totalorder %s66, %s69
      %p78 = scmp.eq.s32.totalorder %s19, 1
      %p79 = por %p77, %p78
      %p80 = scmp.ne.s32.totalorder %s69, %s70
      %p81 = scmp.eq.s32.totalorder %s19, 0
      %p82 = por %p80, %p81
      %p83 = scmp.ne.s32.totalorder %s69, %s70
      %p84 = scmp.eq.s32.totalorder %s20, 1
      %p85 = por %p83, %p84
      %p87 = scmp.ne.s32.totalorder %s70, %s86
      %p88 = scmp.eq.s32.totalorder %s20, 0
      %p89 = por %p87, %p88
      %s90 = ssub.s32 %s14, %s21
      %p91 = scmp.eq.s32.totalorder %s90, 0
      %s93 = sadd.s32 %s92, 1
      %s94 = scalar_select %p91, %s92, %s93
      %p97 = pneg %p91
      %p98 = scmp.eq.s32.totalorder %s14, 1
      %p99 = por %p97, %p98
      %p100 = scmp.ne.s32.totalorder %s92, %s95
      %p101 = scmp.eq.s32.totalorder %s14, 0
      %p102 = por %p100, %p101
      %p103 = scmp.ne.s32.totalorder %s92, %s95
      %p104 = scmp.eq.s32.totalorder %s19, 1
      %p105 = por %p103, %p104
      %p106 = scmp.ne.s32.totalorder %s95, %s96
      %p107 = scmp.eq.s32.totalorder %s19, 0
      %p108 = por %p106, %p107
      %p109 = scmp.ne.s32.totalorder %s95, %s96
      %p110 = scmp.eq.s32.totalorder %s20, 1
      %p111 = por %p109, %p110
      %p113 = scmp.ne.s32.totalorder %s96, %s112
      %p114 = scmp.eq.s32.totalorder %s20, 0
      %p115 = por %p113, %p114
      %p116 = scmp.le.s32.totalorder 1, %s14
      %p117 = scmp.lt.s32.totalorder %s14, 3
      %p118 = pnand %p116, %p117
      %p119 = pneg %p118
      // Predicated region
      $region9: #{get_image_forward.1} parent=5 // pred_check
        _
      $region10: #{get_image_forward.1} parent=5 // pred_check_branch
        %121 = sbr.rel (%p118) target = $region12
      $region11: #{get_image_forward.1} parent=5 // pred_region
        %s122 = ssub.s32 %s14, 1
        // Predicated region
        $region13: #{get_image_forward.1} parent=11 // pred_check
          %p123 = pneg %p35
        $region14: #{get_image_forward.1} parent=11 // pred_check_branch
          %125 = sbr.rel (%p123) target = $region16
        $region15: #{get_image_forward.1} parent=11 // pred_region
          %127 = vsyncadd [#allocation4], 0
          %s129 = sshll.u32 %s0, 4
          %s130 = int_to_ptr.vmem [resolvable:$true] %s129
          %132 = dma.vmem_to_smem %s130, 16, [#allocation2], [#allocation4]
        $region16: #{get_image_forward.1} parent=11 // pred_fallthru
          _
        // Predicated region
        $region17: #{get_image_forward.1} parent=11 // pred_check
          %p133 = pneg %p56
        $region18: #{get_image_forward.1} parent=11 // pred_check_branch
          %135 = sbr.rel (%p133) target = $region20
        $region19: #{get_image_forward.1} parent=11 // pred_region
          %137 = vsyncadd [#allocation6], 0
          %s139 = sshll.u32 %s1, 4
          %s140 = int_to_ptr.vmem [resolvable:$true] %s139
          %142 = dma.vmem_to_smem %s140, 16, [#allocation5], [#allocation6]
        $region20: #{get_image_forward.1} parent=11 // pred_fallthru
          _
      $region12: #{get_image_forward.1} parent=5 // pred_fallthru
        _
      %p143 = scmp.lt.s32.totalorder %s14, 2
      // Predicated region
      $region21: #{get_image_forward.1} parent=5 // pred_check
        %p144 = pneg %p143
      $region22: #{get_image_forward.1} parent=5 // pred_check_branch
        %146 = sbr.rel (%p144) target = $region24
      $region23: #{get_image_forward.1} parent=5 // pred_region
        // Predicated region
        $region25: #{get_image_forward.1} parent=23 // pred_check
          %p147 = pneg %p76
        $region26: #{get_image_forward.1} parent=23 // pred_check_branch
          %149 = sbr.rel (%p147) target = $region28
        $region27: #{get_image_forward.1} parent=23 // pred_region
          %p150 = scmp.lt.s32.totalorder %s14, 1
          %s151 = scalar_select %p150, %s14, 1
          %s152 = smul.addr %s151, 8
          %s153 = smul.addr %s152, 8
          %s154 = scalar_lea.vmem %s2, %s153
        $region28: #{get_image_forward.1} parent=23 // pred_fallthru
          _
      $region24: #{get_image_forward.1} parent=5 // pred_fallthru
        _
      %p155 = scmp.le.s32.totalorder 1, %s14
      %p156 = scmp.lt.s32.totalorder %s14, 3
      %p157 = pnand %p155, %p156
      %p158 = pneg %p157
      // Predicated region
      $region29: #{get_image_forward.1} parent=5 // pred_check
        _
      $region30: #{get_image_forward.1} parent=5 // pred_check_branch
        %160 = sbr.rel (%p157) target = $region32
      $region31: #{get_image_forward.1} parent=5 // pred_region
        %s161 = ssub.s32 %s14, 1
        // Predicated region
        $region33: #{get_image_forward.1} parent=31 // pred_check
          %p162 = pneg %p35
        $region34: #{get_image_forward.1} parent=31 // pred_check_branch
          %164 = sbr.rel (%p162) target = $region36
        $region35: #{get_image_forward.1} parent=31 // pred_region
          %166 = dma.done [#allocation4], 16
        $region36: #{get_image_forward.1} parent=31 // pred_fallthru
          _
        // Predicated region
        $region37: #{get_image_forward.1} parent=31 // pred_check
          %p167 = pneg %p56
        $region38: #{get_image_forward.1} parent=31 // pred_check_branch
          %169 = sbr.rel (%p167) target = $region40
        $region39: #{get_image_forward.1} parent=31 // pred_region
          %171 = dma.done [#allocation6], 16
        $region40: #{get_image_forward.1} parent=31 // pred_fallthru
          _
        %172 = sfence
        %p173 = pneg %p35
        %p174 = pneg %p32
        %p175 = pneg %p56
        %p176 = pneg %p53
        %p177 = scmp.lt.s32.totalorder %s19, 1
        %s178 = scalar_select %p177, %s19, 1
        %s179 = smul.addr %s178, 8
        %s180 = smul.addr %s179, 8
        %s181 = scalar_lea.vmem %s2, %s180
        %p182 = pneg %p82
        %p183 = pneg %p79
        %p184 = pneg %p108
        %p185 = pneg %p105
        %s186 = sand.u32 %s95, 1
        %s187 = scalar_lea.sflag [#allocation3], %s186
        %s188 = sand.u32 %s95, 1
        %s189 = smul.addr %s188, 48
        %s190 = scalar_lea.vmem [#allocation7], %s189
        %p191 = scmp.lt.s32.totalorder %s19, 1
        %s192 = scalar_select %p191, %s19, 1
        %s193 = smul.addr %s192, 8
        %s194 = smul.addr %s193, 8
        %s195 = scalar_lea.vmem %s2, %s194
        %v196 = vld [vmem:[%s195] sm:$0xff]
        %v197 = vld [vmem:[%s195 + $0x8] sm:$0xff]
        %v198 = vld [vmem:[%s195 + $0x10] sm:$0xff]
        %v199 = vld [vmem:[%s195 + $0x18] sm:$0xff]
        %v200 = vld [vmem:[%s195 + $0x20] sm:$0xff]
        %v201 = vld [vmem:[%s195 + $0x28] sm:$0xff]
        %v202 = vld [vmem:[%s195 + $0x30] sm:$0xff]
        %v203 = vld [vmem:[%s195 + $0x38] sm:$0xff]
        %212 = vrot.lane.b32.xlu0 %v196, 127
        %v213 = vpop.permute.xlu0 %212
        %214 = vrot.lane.b32.xlu0 %v197, 127
        %v215 = vpop.permute.xlu0 %214
        %216 = vrot.lane.b32.xlu0 %v198, 127
        %v217 = vpop.permute.xlu0 %216
        %218 = vrot.lane.b32.xlu0 %v199, 127
        %v219 = vpop.permute.xlu0 %218
        %220 = vrot.lane.b32.xlu0 %v200, 127
        %v221 = vpop.permute.xlu0 %220
        %222 = vrot.lane.b32.xlu0 %v201, 127
        %v223 = vpop.permute.xlu0 %222
        %224 = vrot.lane.b32.xlu0 %v202, 127
        %v225 = vpop.permute.xlu0 %224
        %226 = vrot.lane.b32.xlu0 %v203, 127
        %v227 = vpop.permute.xlu0 %226
        %236 = vrot.lane.b32.xlu0 %v196, 1
        %v237 = vpop.permute.xlu0 %236
        %238 = vrot.lane.b32.xlu0 %v197, 1
        %v239 = vpop.permute.xlu0 %238
        %240 = vrot.lane.b32.xlu0 %v198, 1
        %v241 = vpop.permute.xlu0 %240
        %242 = vrot.lane.b32.xlu0 %v199, 1
        %v243 = vpop.permute.xlu0 %242
        %244 = vrot.lane.b32.xlu0 %v200, 1
        %v245 = vpop.permute.xlu0 %244
        %246 = vrot.lane.b32.xlu0 %v201, 1
        %v247 = vpop.permute.xlu0 %246
        %248 = vrot.lane.b32.xlu0 %v202, 1
        %v249 = vpop.permute.xlu0 %248
        %250 = vrot.lane.b32.xlu0 %v203, 1
        %v251 = vpop.permute.xlu0 %250
        %260 = vrot.lane.b32.xlu0 %v196, 3
        %v261 = vpop.permute.xlu0 %260
        %262 = vrot.lane.b32.xlu0 %v197, 3
        %v263 = vpop.permute.xlu0 %262
        %264 = vrot.lane.b32.xlu0 %v198, 3
        %v265 = vpop.permute.xlu0 %264
        %266 = vrot.lane.b32.xlu0 %v199, 3
        %v267 = vpop.permute.xlu0 %266
        %268 = vrot.lane.b32.xlu0 %v200, 3
        %v269 = vpop.permute.xlu0 %268
        %270 = vrot.lane.b32.xlu0 %v201, 3
        %v271 = vpop.permute.xlu0 %270
        %272 = vrot.lane.b32.xlu0 %v202, 3
        %v273 = vpop.permute.xlu0 %272
        %274 = vrot.lane.b32.xlu0 %v203, 3
        %v275 = vpop.permute.xlu0 %274
        %vm284 = vcmask 7168
        %v285 = vsel %vm284, %v213, %v237
        %v286 = vsel %vm284, %v215, %v239
        %v287 = vsel %vm284, %v217, %v241
        %v288 = vsel %vm284, %v219, %v243
        %v289 = vsel %vm284, %v221, %v245
        %v290 = vsel %vm284, %v223, %v247
        %v291 = vsel %vm284, %v225, %v249
        %v292 = vsel %vm284, %v227, %v251
        %vm293 = vcmask 138240
        %v294 = vsel %vm293, %v285, %v261
        %v295 = vsel %vm293, %v286, %v263
        %v296 = vsel %vm293, %v287, %v265
        %v297 = vsel %vm293, %v288, %v267
        %v298 = vsel %vm293, %v289, %v269
        %v299 = vsel %vm293, %v290, %v271
        %v300 = vsel %vm293, %v291, %v273
        %v301 = vsel %vm293, %v292, %v275
        %v306 = vrot.slane %v294, 1
        %v307 = vrot.slane %v296, 1
        %v308 = vrot.slane %v298, 1
        %v309 = vrot.slane %v300, 1
        %vm318 = vcmask 1040384
        %v319 = vrot.slane %v294, 7
        %v320 = vrot.slane %v295, 7
        %v321 = vsel %vm318, %v319, %v320
        %v322 = vrot.slane %v296, 7
        %v323 = vrot.slane %v297, 7
        %v324 = vsel %vm318, %v322, %v323
        %v325 = vrot.slane %v298, 7
        %v326 = vrot.slane %v299, 7
        %v327 = vsel %vm318, %v325, %v326
        %v328 = vrot.slane %v300, 7
        %v329 = vrot.slane %v301, 7
        %v330 = vsel %vm318, %v328, %v329
        %v343 = vrot.slane %v295, 5
        %v344 = vrot.slane %v297, 5
        %v345 = vrot.slane %v299, 5
        %v346 = vrot.slane %v301, 5
        %v351 = vsel %vm318, %v306, %v319
        %v352 = vsel %vm318, %v307, %v322
        %v353 = vsel %vm318, %v308, %v325
        %v354 = vsel %vm318, %v309, %v328
        %v355 = vsel %vm318, %v320, %v343
        %v356 = vsel %vm318, %v323, %v344
        %v357 = vsel %vm318, %v326, %v345
        %v358 = vsel %vm318, %v329, %v346
        %s359 = sld [smem:[#allocation2]]
        %v360 = vstv %s359
        %v361 = vmul.f32 %v360, %v351
        %v362 = vmul.f32 %v360, %v321
        %v363 = vadd.f32 %v361, 0.0
        %v364 = vadd.f32 %v362, 0.0
        %s365 = sld [smem:[#allocation2 + $0x24]]
        %v366 = vstv %s365
        %v367 = vmul.f32 %v366, %v351
        %v368 = vmul.f32 %v366, %v321
        %v369 = vadd.f32 %v367, 0.0
        %v370 = vadd.f32 %v368, 0.0
        %s371 = sld [smem:[#allocation2 + $0x48]]
        %v372 = vstv %s371
        %v373 = vmul.f32 %v372, %v351
        %v374 = vmul.f32 %v372, %v321
        %v375 = vadd.f32 %v373, 0.0
        %v376 = vadd.f32 %v374, 0.0
        %s377 = sld [smem:[#allocation2 + $0x1]]
        %v378 = vstv %s377
        %v379 = vmul.f32 %v378, %v351
        %v380 = vmul.f32 %v378, %v321
        %383 = vrot.lane.b32.xlu0 %v379, 127
        %v384 = vpop.permute.xlu0 %383
        %385 = vrot.lane.b32.xlu0 %v380, 127
        %v386 = vpop.permute.xlu0 %385
        %v389 = vadd.f32 %v363, %v384
        %v390 = vadd.f32 %v364, %v386
        %s391 = sld [smem:[#allocation2 + $0x25]]
        %v392 = vstv %s391
        %v393 = vmul.f32 %v392, %v351
        %v394 = vmul.f32 %v392, %v321
        %397 = vrot.lane.b32.xlu0 %v393, 127
        %v398 = vpop.permute.xlu0 %397
        %399 = vrot.lane.b32.xlu0 %v394, 127
        %v400 = vpop.permute.xlu0 %399
        %v403 = vadd.f32 %v369, %v398
        %v404 = vadd.f32 %v370, %v400
        %s405 = sld [smem:[#allocation2 + $0x49]]
        %v406 = vstv %s405
        %v407 = vmul.f32 %v406, %v351
        %v408 = vmul.f32 %v406, %v321
        %411 = vrot.lane.b32.xlu0 %v407, 127
        %v412 = vpop.permute.xlu0 %411
        %413 = vrot.lane.b32.xlu0 %v408, 127
        %v414 = vpop.permute.xlu0 %413
        %v417 = vadd.f32 %v375, %v412
        %v418 = vadd.f32 %v376, %v414
        %s419 = sld [smem:[#allocation2 + $0x2]]
        %v420 = vstv %s419
        %v421 = vmul.f32 %v420, %v351
        %v422 = vmul.f32 %v420, %v321
        %425 = vrot.lane.b32.xlu0 %v421, 126
        %v426 = vpop.permute.xlu0 %425
        %427 = vrot.lane.b32.xlu0 %v422, 126
        %v428 = vpop.permute.xlu0 %427
        %v431 = vadd.f32 %v389, %v426
        %v432 = vadd.f32 %v390, %v428
        %s433 = sld [smem:[#allocation2 + $0x26]]
        %v434 = vstv %s433
        %v435 = vmul.f32 %v434, %v351
        %v436 = vmul.f32 %v434, %v321
        %439 = vrot.lane.b32.xlu0 %v435, 126
        %v440 = vpop.permute.xlu0 %439
        %441 = vrot.lane.b32.xlu0 %v436, 126
        %v442 = vpop.permute.xlu0 %441
        %v445 = vadd.f32 %v403, %v440
        %v446 = vadd.f32 %v404, %v442
        %s447 = sld [smem:[#allocation2 + $0x4a]]
        %v448 = vstv %s447
        %v449 = vmul.f32 %v448, %v351
        %v450 = vmul.f32 %v448, %v321
        %453 = vrot.lane.b32.xlu0 %v449, 126
        %v454 = vpop.permute.xlu0 %453
        %455 = vrot.lane.b32.xlu0 %v450, 126
        %v456 = vpop.permute.xlu0 %455
        %v459 = vadd.f32 %v417, %v454
        %v460 = vadd.f32 %v418, %v456
        %s461 = sld [smem:[#allocation2 + $0x3]]
        %v462 = vstv %s461
        %v463 = vmul.f32 %v462, %v351
        %v464 = vmul.f32 %v462, %v321
        %v465 = vmul.f32 %v462, %v355
        %vm469 = vcmask 1046528
        %v470 = vrot.slane %v463, 1
        %v471 = vrot.slane %v464, 1
        %v472 = vsel %vm469, %v470, %v471
        %v473 = vrot.slane %v465, 1
        %v474 = vsel %vm469, %v471, %v473
        %v477 = vadd.f32 %v431, %v472
        %v478 = vadd.f32 %v432, %v474
        %s479 = sld [smem:[#allocation2 + $0x27]]
        %v480 = vstv %s479
        %v481 = vmul.f32 %v480, %v351
        %v482 = vmul.f32 %v480, %v321
        %v483 = vmul.f32 %v480, %v355
        %v487 = vrot.slane %v481, 1
        %v488 = vrot.slane %v482, 1
        %v489 = vsel %vm469, %v487, %v488
        %v490 = vrot.slane %v483, 1
        %v491 = vsel %vm469, %v488, %v490
        %v494 = vadd.f32 %v445, %v489
        %v495 = vadd.f32 %v446, %v491
        %s496 = sld [smem:[#allocation2 + $0x4b]]
        %v497 = vstv %s496
        %v498 = vmul.f32 %v497, %v351
        %v499 = vmul.f32 %v497, %v321
        %v500 = vmul.f32 %v497, %v355
        %v504 = vrot.slane %v498, 1
        %v505 = vrot.slane %v499, 1
        %v506 = vsel %vm469, %v504, %v505
        %v507 = vrot.slane %v500, 1
        %v508 = vsel %vm469, %v505, %v507
        %v511 = vadd.f32 %v459, %v506
        %v512 = vadd.f32 %v460, %v508
        %s513 = sld [smem:[#allocation2 + $0x4]]
        %v514 = vstv %s513
        %v515 = vmul.f32 %v514, %v351
        %v516 = vmul.f32 %v514, %v321
        %v517 = vmul.f32 %v514, %v355
        %v521 = vrot.slane %v515, 1
        %v522 = vrot.slane %v516, 1
        %v523 = vsel %vm469, %v521, %v522
        %v524 = vrot.slane %v517, 1
        %v525 = vsel %vm469, %v522, %v524
        %526 = vrot.lane.b32.xlu0 %v523, 127
        %v527 = vpop.permute.xlu0 %526
        %528 = vrot.lane.b32.xlu0 %v525, 127
        %v529 = vpop.permute.xlu0 %528
        %v532 = vadd.f32 %v477, %v527
        %v533 = vadd.f32 %v478, %v529
        %s534 = sld [smem:[#allocation2 + $0x28]]
        %v535 = vstv %s534
        %v536 = vmul.f32 %v535, %v351
        %v537 = vmul.f32 %v535, %v321
        %v538 = vmul.f32 %v535, %v355
        %v542 = vrot.slane %v536, 1
        %v543 = vrot.slane %v537, 1
        %v544 = vsel %vm469, %v542, %v543
        %v545 = vrot.slane %v538, 1
        %v546 = vsel %vm469, %v543, %v545
        %547 = vrot.lane.b32.xlu0 %v544, 127
        %v548 = vpop.permute.xlu0 %547
        %549 = vrot.lane.b32.xlu0 %v546, 127
        %v550 = vpop.permute.xlu0 %549
        %v553 = vadd.f32 %v494, %v548
        %v554 = vadd.f32 %v495, %v550
        %s555 = sld [smem:[#allocation2 + $0x4c]]
        %v556 = vstv %s555
        %v557 = vmul.f32 %v556, %v351
        %v558 = vmul.f32 %v556, %v321
        %v559 = vmul.f32 %v556, %v355
        %v563 = vrot.slane %v557, 1
        %v564 = vrot.slane %v558, 1
        %v565 = vsel %vm469, %v563, %v564
        %v566 = vrot.slane %v559, 1
        %v567 = vsel %vm469, %v564, %v566
        %568 = vrot.lane.b32.xlu0 %v565, 127
        %v569 = vpop.permute.xlu0 %568
        %570 = vrot.lane.b32.xlu0 %v567, 127
        %v571 = vpop.permute.xlu0 %570
        %v574 = vadd.f32 %v511, %v569
        %v575 = vadd.f32 %v512, %v571
        %s576 = sld [smem:[#allocation2 + $0x5]]
        %v577 = vstv %s576
        %v578 = vmul.f32 %v577, %v351
        %v579 = vmul.f32 %v577, %v321
        %v580 = vmul.f32 %v577, %v355
        %v584 = vrot.slane %v578, 1
        %v585 = vrot.slane %v579, 1
        %v586 = vsel %vm469, %v584, %v585
        %v587 = vrot.slane %v580, 1
        %v588 = vsel %vm469, %v585, %v587
        %589 = vrot.lane.b32.xlu0 %v586, 126
        %v590 = vpop.permute.xlu0 %589
        %591 = vrot.lane.b32.xlu0 %v588, 126
        %v592 = vpop.permute.xlu0 %591
        %v595 = vadd.f32 %v532, %v590
        %v596 = vadd.f32 %v533, %v592
        %s597 = sld [smem:[#allocation2 + $0x29]]
        %v598 = vstv %s597
        %v599 = vmul.f32 %v598, %v351
        %v600 = vmul.f32 %v598, %v321
        %v601 = vmul.f32 %v598, %v355
        %v605 = vrot.slane %v599, 1
        %v606 = vrot.slane %v600, 1
        %v607 = vsel %vm469, %v605, %v606
        %v608 = vrot.slane %v601, 1
        %v609 = vsel %vm469, %v606, %v608
        %610 = vrot.lane.b32.xlu0 %v607, 126
        %v611 = vpop.permute.xlu0 %610
        %612 = vrot.lane.b32.xlu0 %v609, 126
        %v613 = vpop.permute.xlu0 %612
        %v616 = vadd.f32 %v553, %v611
        %v617 = vadd.f32 %v554, %v613
        %s618 = sld [smem:[#allocation2 + $0x4d]]
        %v619 = vstv %s618
        %v620 = vmul.f32 %v619, %v351
        %v621 = vmul.f32 %v619, %v321
        %v622 = vmul.f32 %v619, %v355
        %v626 = vrot.slane %v620, 1
        %v627 = vrot.slane %v621, 1
        %v628 = vsel %vm469, %v626, %v627
        %v629 = vrot.slane %v622, 1
        %v630 = vsel %vm469, %v627, %v629
        %631 = vrot.lane.b32.xlu0 %v628, 126
        %v632 = vpop.permute.xlu0 %631
        %633 = vrot.lane.b32.xlu0 %v630, 126
        %v634 = vpop.permute.xlu0 %633
        %v637 = vadd.f32 %v574, %v632
        %v638 = vadd.f32 %v575, %v634
        %s639 = sld [smem:[#allocation2 + $0x6]]
        %v640 = vstv %s639
        %v641 = vmul.f32 %v640, %v351
        %v642 = vmul.f32 %v640, %v321
        %v643 = vmul.f32 %v640, %v355
        %vm647 = vcmask 1045504
        %v648 = vrot.slane %v641, 2
        %v649 = vrot.slane %v642, 2
        %v650 = vsel %vm647, %v648, %v649
        %v651 = vrot.slane %v643, 2
        %v652 = vsel %vm647, %v649, %v651
        %v655 = vadd.f32 %v595, %v650
        %v656 = vadd.f32 %v596, %v652
        %s657 = sld [smem:[#allocation2 + $0x2a]]
        %v658 = vstv %s657
        %v659 = vmul.f32 %v658, %v351
        %v660 = vmul.f32 %v658, %v321
        %v661 = vmul.f32 %v658, %v355
        %v665 = vrot.slane %v659, 2
        %v666 = vrot.slane %v660, 2
        %v667 = vsel %vm647, %v665, %v666
        %v668 = vrot.slane %v661, 2
        %v669 = vsel %vm647, %v666, %v668
        %v672 = vadd.f32 %v616, %v667
        %v673 = vadd.f32 %v617, %v669
        %s674 = sld [smem:[#allocation2 + $0x4e]]
        %v675 = vstv %s674
        %v676 = vmul.f32 %v675, %v351
        %v677 = vmul.f32 %v675, %v321
        %v678 = vmul.f32 %v675, %v355
        %v682 = vrot.slane %v676, 2
        %v683 = vrot.slane %v677, 2
        %v684 = vsel %vm647, %v682, %v683
        %v685 = vrot.slane %v678, 2
        %v686 = vsel %vm647, %v683, %v685
        %v689 = vadd.f32 %v637, %v684
        %v690 = vadd.f32 %v638, %v686
        %s691 = sld [smem:[#allocation2 + $0x7]]
        %v692 = vstv %s691
        %v693 = vmul.f32 %v692, %v351
        %v694 = vmul.f32 %v692, %v321
        %v695 = vmul.f32 %v692, %v355
        %v699 = vrot.slane %v693, 2
        %v700 = vrot.slane %v694, 2
        %v701 = vsel %vm647, %v699, %v700
        %v702 = vrot.slane %v695, 2
        %v703 = vsel %vm647, %v700, %v702
        %704 = vrot.lane.b32.xlu0 %v701, 127
        %v705 = vpop.permute.xlu0 %704
        %706 = vrot.lane.b32.xlu0 %v703, 127
        %v707 = vpop.permute.xlu0 %706
        %v710 = vadd.f32 %v655, %v705
        %v711 = vadd.f32 %v656, %v707
        %s712 = sld [smem:[#allocation2 + $0x2b]]
        %v713 = vstv %s712
        %v714 = vmul.f32 %v713, %v351
        %v715 = vmul.f32 %v713, %v321
        %v716 = vmul.f32 %v713, %v355
        %v720 = vrot.slane %v714, 2
        %v721 = vrot.slane %v715, 2
        %v722 = vsel %vm647, %v720, %v721
        %v723 = vrot.slane %v716, 2
        %v724 = vsel %vm647, %v721, %v723
        %725 = vrot.lane.b32.xlu0 %v722, 127
        %v726 = vpop.permute.xlu0 %725
        %727 = vrot.lane.b32.xlu0 %v724, 127
        %v728 = vpop.permute.xlu0 %727
        %v731 = vadd.f32 %v672, %v726
        %v732 = vadd.f32 %v673, %v728
        %s733 = sld [smem:[#allocation2 + $0x4f]]
        %v734 = vstv %s733
        %v735 = vmul.f32 %v734, %v351
        %v736 = vmul.f32 %v734, %v321
        %v737 = vmul.f32 %v734, %v355
        %v741 = vrot.slane %v735, 2
        %v742 = vrot.slane %v736, 2
        %v743 = vsel %vm647, %v741, %v742
        %v744 = vrot.slane %v737, 2
        %v745 = vsel %vm647, %v742, %v744
        %746 = vrot.lane.b32.xlu0 %v743, 127
        %v747 = vpop.permute.xlu0 %746
        %748 = vrot.lane.b32.xlu0 %v745, 127
        %v749 = vpop.permute.xlu0 %748
        %v752 = vadd.f32 %v689, %v747
        %v753 = vadd.f32 %v690, %v749
        %s754 = sld [smem:[#allocation2 + $0x8]]
        %v755 = vstv %s754
        %v756 = vmul.f32 %v755, %v351
        %v757 = vmul.f32 %v755, %v321
        %v758 = vmul.f32 %v755, %v355
        %v762 = vrot.slane %v756, 2
        %v763 = vrot.slane %v757, 2
        %v764 = vsel %vm647, %v762, %v763
        %v765 = vrot.slane %v758, 2
        %v766 = vsel %vm647, %v763, %v765
        %767 = vrot.lane.b32.xlu0 %v764, 126
        %v768 = vpop.permute.xlu0 %767
        %769 = vrot.lane.b32.xlu0 %v766, 126
        %v770 = vpop.permute.xlu0 %769
        %v773 = vadd.f32 %v710, %v768
        %v774 = vadd.f32 %v711, %v770
        %s775 = sld [smem:[#allocation2 + $0x2c]]
        %v776 = vstv %s775
        %v777 = vmul.f32 %v776, %v351
        %v778 = vmul.f32 %v776, %v321
        %v779 = vmul.f32 %v776, %v355
        %v783 = vrot.slane %v777, 2
        %v784 = vrot.slane %v778, 2
        %v785 = vsel %vm647, %v783, %v784
        %v786 = vrot.slane %v779, 2
        %v787 = vsel %vm647, %v784, %v786
        %788 = vrot.lane.b32.xlu0 %v785, 126
        %v789 = vpop.permute.xlu0 %788
        %790 = vrot.lane.b32.xlu0 %v787, 126
        %v791 = vpop.permute.xlu0 %790
        %v794 = vadd.f32 %v731, %v789
        %v795 = vadd.f32 %v732, %v791
        %s796 = sld [smem:[#allocation2 + $0x50]]
        %v797 = vstv %s796
        %v798 = vmul.f32 %v797, %v351
        %v799 = vmul.f32 %v797, %v321
        %v800 = vmul.f32 %v797, %v355
        %v804 = vrot.slane %v798, 2
        %v805 = vrot.slane %v799, 2
        %v806 = vsel %vm647, %v804, %v805
        %v807 = vrot.slane %v800, 2
        %v808 = vsel %vm647, %v805, %v807
        %809 = vrot.lane.b32.xlu0 %v806, 126
        %v810 = vpop.permute.xlu0 %809
        %811 = vrot.lane.b32.xlu0 %v808, 126
        %v812 = vpop.permute.xlu0 %811
        %v815 = vadd.f32 %v752, %v810
        %v816 = vadd.f32 %v753, %v812
        %s817 = sld [smem:[#allocation2 + $0x9]]
        %v818 = vstv %s817
        %v819 = vmul.f32 %v818, %v352
        %v820 = vmul.f32 %v818, %v324
        %v821 = vadd.f32 %v773, %v819
        %v822 = vadd.f32 %v774, %v820
        %s823 = sld [smem:[#allocation2 + $0x2d]]
        %v824 = vstv %s823
        %v825 = vmul.f32 %v824, %v352
        %v826 = vmul.f32 %v824, %v324
        %v827 = vadd.f32 %v794, %v825
        %v828 = vadd.f32 %v795, %v826
        %s829 = sld [smem:[#allocation2 + $0x51]]
        %v830 = vstv %s829
        %v831 = vmul.f32 %v830, %v352
        %v832 = vmul.f32 %v830, %v324
        %v833 = vadd.f32 %v815, %v831
        %v834 = vadd.f32 %v816, %v832
        %s835 = sld [smem:[#allocation2 + $0xa]]
        %v836 = vstv %s835
        %v837 = vmul.f32 %v836, %v352
        %v838 = vmul.f32 %v836, %v324
        %841 = vrot.lane.b32.xlu0 %v837, 127
        %v842 = vpop.permute.xlu0 %841
        %843 = vrot.lane.b32.xlu0 %v838, 127
        %v844 = vpop.permute.xlu0 %843
        %v847 = vadd.f32 %v821, %v842
        %v848 = vadd.f32 %v822, %v844
        %s849 = sld [smem:[#allocation2 + $0x2e]]
        %v850 = vstv %s849
        %v851 = vmul.f32 %v850, %v352
        %v852 = vmul.f32 %v850, %v324
        %855 = vrot.lane.b32.xlu0 %v851, 127
        %v856 = vpop.permute.xlu0 %855
        %857 = vrot.lane.b32.xlu0 %v852, 127
        %v858 = vpop.permute.xlu0 %857
        %v861 = vadd.f32 %v827, %v856
        %v862 = vadd.f32 %v828, %v858
        %s863 = sld [smem:[#allocation2 + $0x52]]
        %v864 = vstv %s863
        %v865 = vmul.f32 %v864, %v352
        %v866 = vmul.f32 %v864, %v324
        %869 = vrot.lane.b32.xlu0 %v865, 127
        %v870 = vpop.permute.xlu0 %869
        %871 = vrot.lane.b32.xlu0 %v866, 127
        %v872 = vpop.permute.xlu0 %871
        %v875 = vadd.f32 %v833, %v870
        %v876 = vadd.f32 %v834, %v872
        %s877 = sld [smem:[#allocation2 + $0xb]]
        %v878 = vstv %s877
        %v879 = vmul.f32 %v878, %v352
        %v880 = vmul.f32 %v878, %v324
        %883 = vrot.lane.b32.xlu0 %v879, 126
        %v884 = vpop.permute.xlu0 %883
        %885 = vrot.lane.b32.xlu0 %v880, 126
        %v886 = vpop.permute.xlu0 %885
        %v889 = vadd.f32 %v847, %v884
        %v890 = vadd.f32 %v848, %v886
        %s891 = sld [smem:[#allocation2 + $0x2f]]
        %v892 = vstv %s891
        %v893 = vmul.f32 %v892, %v352
        %v894 = vmul.f32 %v892, %v324
        %897 = vrot.lane.b32.xlu0 %v893, 126
        %v898 = vpop.permute.xlu0 %897
        %899 = vrot.lane.b32.xlu0 %v894, 126
        %v900 = vpop.permute.xlu0 %899
        %v903 = vadd.f32 %v861, %v898
        %v904 = vadd.f32 %v862, %v900
        %s905 = sld [smem:[#allocation2 + $0x53]]
        %v906 = vstv %s905
        %v907 = vmul.f32 %v906, %v352
        %v908 = vmul.f32 %v906, %v324
        %911 = vrot.lane.b32.xlu0 %v907, 126
        %v912 = vpop.permute.xlu0 %911
        %913 = vrot.lane.b32.xlu0 %v908, 126
        %v914 = vpop.permute.xlu0 %913
        %v917 = vadd.f32 %v875, %v912
        %v918 = vadd.f32 %v876, %v914
        %s919 = sld [smem:[#allocation2 + $0xc]]
        %v920 = vstv %s919
        %v921 = vmul.f32 %v920, %v352
        %v922 = vmul.f32 %v920, %v324
        %v923 = vmul.f32 %v920, %v356
        %v927 = vrot.slane %v921, 1
        %v928 = vrot.slane %v922, 1
        %v929 = vsel %vm469, %v927, %v928
        %v930 = vrot.slane %v923, 1
        %v931 = vsel %vm469, %v928, %v930
        %v934 = vadd.f32 %v889, %v929
        %v935 = vadd.f32 %v890, %v931
        %s936 = sld [smem:[#allocation2 + $0x30]]
        %v937 = vstv %s936
        %v938 = vmul.f32 %v937, %v352
        %v939 = vmul.f32 %v937, %v324
        %v940 = vmul.f32 %v937, %v356
        %v944 = vrot.slane %v938, 1
        %v945 = vrot.slane %v939, 1
        %v946 = vsel %vm469, %v944, %v945
        %v947 = vrot.slane %v940, 1
        %v948 = vsel %vm469, %v945, %v947
        %v951 = vadd.f32 %v903, %v946
        %v952 = vadd.f32 %v904, %v948
        %s953 = sld [smem:[#allocation2 + $0x54]]
        %v954 = vstv %s953
        %v955 = vmul.f32 %v954, %v352
        %v956 = vmul.f32 %v954, %v324
        %v957 = vmul.f32 %v954, %v356
        %v961 = vrot.slane %v955, 1
        %v962 = vrot.slane %v956, 1
        %v963 = vsel %vm469, %v961, %v962
        %v964 = vrot.slane %v957, 1
        %v965 = vsel %vm469, %v962, %v964
        %v968 = vadd.f32 %v917, %v963
        %v969 = vadd.f32 %v918, %v965
        %s970 = sld [smem:[#allocation2 + $0xd]]
        %v971 = vstv %s970
        %v972 = vmul.f32 %v971, %v352
        %v973 = vmul.f32 %v971, %v324
        %v974 = vmul.f32 %v971, %v356
        %v978 = vrot.slane %v972, 1
        %v979 = vrot.slane %v973, 1
        %v980 = vsel %vm469, %v978, %v979
        %v981 = vrot.slane %v974, 1
        %v982 = vsel %vm469, %v979, %v981
        %983 = vrot.lane.b32.xlu0 %v980, 127
        %v984 = vpop.permute.xlu0 %983
        %985 = vrot.lane.b32.xlu0 %v982, 127
        %v986 = vpop.permute.xlu0 %985
        %v989 = vadd.f32 %v934, %v984
        %v990 = vadd.f32 %v935, %v986
        %s991 = sld [smem:[#allocation2 + $0x31]]
        %v992 = vstv %s991
        %v993 = vmul.f32 %v992, %v352
        %v994 = vmul.f32 %v992, %v324
        %v995 = vmul.f32 %v992, %v356
        %v999 = vrot.slane %v993, 1
        %v1000 = vrot.slane %v994, 1
        %v1001 = vsel %vm469, %v999, %v1000
        %v1002 = vrot.slane %v995, 1
        %v1003 = vsel %vm469, %v1000, %v1002
        %1004 = vrot.lane.b32.xlu0 %v1001, 127
        %v1005 = vpop.permute.xlu0 %1004
        %1006 = vrot.lane.b32.xlu0 %v1003, 127
        %v1007 = vpop.permute.xlu0 %1006
        %v1010 = vadd.f32 %v951, %v1005
        %v1011 = vadd.f32 %v952, %v1007
        %s1012 = sld [smem:[#allocation2 + $0x55]]
        %v1013 = vstv %s1012
        %v1014 = vmul.f32 %v1013, %v352
        %v1015 = vmul.f32 %v1013, %v324
        %v1016 = vmul.f32 %v1013, %v356
        %v1020 = vrot.slane %v1014, 1
        %v1021 = vrot.slane %v1015, 1
        %v1022 = vsel %vm469, %v1020, %v1021
        %v1023 = vrot.slane %v1016, 1
        %v1024 = vsel %vm469, %v1021, %v1023
        %1025 = vrot.lane.b32.xlu0 %v1022, 127
        %v1026 = vpop.permute.xlu0 %1025
        %1027 = vrot.lane.b32.xlu0 %v1024, 127
        %v1028 = vpop.permute.xlu0 %1027
        %v1031 = vadd.f32 %v968, %v1026
        %v1032 = vadd.f32 %v969, %v1028
        %s1033 = sld [smem:[#allocation2 + $0xe]]
        %v1034 = vstv %s1033
        %v1035 = vmul.f32 %v1034, %v352
        %v1036 = vmul.f32 %v1034, %v324
        %v1037 = vmul.f32 %v1034, %v356
        %v1041 = vrot.slane %v1035, 1
        %v1042 = vrot.slane %v1036, 1
        %v1043 = vsel %vm469, %v1041, %v1042
        %v1044 = vrot.slane %v1037, 1
        %v1045 = vsel %vm469, %v1042, %v1044
        %1046 = vrot.lane.b32.xlu0 %v1043, 126
        %v1047 = vpop.permute.xlu0 %1046
        %1048 = vrot.lane.b32.xlu0 %v1045, 126
        %v1049 = vpop.permute.xlu0 %1048
        %v1052 = vadd.f32 %v989, %v1047
        %v1053 = vadd.f32 %v990, %v1049
        %s1054 = sld [smem:[#allocation2 + $0x32]]
        %v1055 = vstv %s1054
        %v1056 = vmul.f32 %v1055, %v352
        %v1057 = vmul.f32 %v1055, %v324
        %v1058 = vmul.f32 %v1055, %v356
        %v1062 = vrot.slane %v1056, 1
        %v1063 = vrot.slane %v1057, 1
        %v1064 = vsel %vm469, %v1062, %v1063
        %v1065 = vrot.slane %v1058, 1
        %v1066 = vsel %vm469, %v1063, %v1065
        %1067 = vrot.lane.b32.xlu0 %v1064, 126
        %v1068 = vpop.permute.xlu0 %1067
        %1069 = vrot.lane.b32.xlu0 %v1066, 126
        %v1070 = vpop.permute.xlu0 %1069
        %v1073 = vadd.f32 %v1010, %v1068
        %v1074 = vadd.f32 %v1011, %v1070
        %s1075 = sld [smem:[#allocation2 + $0x56]]
        %v1076 = vstv %s1075
        %v1077 = vmul.f32 %v1076, %v352
        %v1078 = vmul.f32 %v1076, %v324
        %v1079 = vmul.f32 %v1076, %v356
        %v1083 = vrot.slane %v1077, 1
        %v1084 = vrot.slane %v1078, 1
        %v1085 = vsel %vm469, %v1083, %v1084
        %v1086 = vrot.slane %v1079, 1
        %v1087 = vsel %vm469, %v1084, %v1086
        %1088 = vrot.lane.b32.xlu0 %v1085, 126
        %v1089 = vpop.permute.xlu0 %1088
        %1090 = vrot.lane.b32.xlu0 %v1087, 126
        %v1091 = vpop.permute.xlu0 %1090
        %v1094 = vadd.f32 %v1031, %v1089
        %v1095 = vadd.f32 %v1032, %v1091
        %s1096 = sld [smem:[#allocation2 + $0xf]]
        %v1097 = vstv %s1096
        %v1098 = vmul.f32 %v1097, %v352
        %v1099 = vmul.f32 %v1097, %v324
        %v1100 = vmul.f32 %v1097, %v356
        %v1104 = vrot.slane %v1098, 2
        %v1105 = vrot.slane %v1099, 2
        %v1106 = vsel %vm647, %v1104, %v1105
        %v1107 = vrot.slane %v1100, 2
        %v1108 = vsel %vm647, %v1105, %v1107
        %v1111 = vadd.f32 %v1052, %v1106
        %v1112 = vadd.f32 %v1053, %v1108
        %s1113 = sld [smem:[#allocation2 + $0x33]]
        %v1114 = vstv %s1113
        %v1115 = vmul.f32 %v1114, %v352
        %v1116 = vmul.f32 %v1114, %v324
        %v1117 = vmul.f32 %v1114, %v356
        %v1121 = vrot.slane %v1115, 2
        %v1122 = vrot.slane %v1116, 2
        %v1123 = vsel %vm647, %v1121, %v1122
        %v1124 = vrot.slane %v1117, 2
        %v1125 = vsel %vm647, %v1122, %v1124
        %v1128 = vadd.f32 %v1073, %v1123
        %v1129 = vadd.f32 %v1074, %v1125
        %s1130 = sld [smem:[#allocation2 + $0x57]]
        %v1131 = vstv %s1130
        %v1132 = vmul.f32 %v1131, %v352
        %v1133 = vmul.f32 %v1131, %v324
        %v1134 = vmul.f32 %v1131, %v356
        %v1138 = vrot.slane %v1132, 2
        %v1139 = vrot.slane %v1133, 2
        %v1140 = vsel %vm647, %v1138, %v1139
        %v1141 = vrot.slane %v1134, 2
        %v1142 = vsel %vm647, %v1139, %v1141
        %v1145 = vadd.f32 %v1094, %v1140
        %v1146 = vadd.f32 %v1095, %v1142
        %s1147 = sld [smem:[#allocation2 + $0x10]]
        %v1148 = vstv %s1147
        %v1149 = vmul.f32 %v1148, %v352
        %v1150 = vmul.f32 %v1148, %v324
        %v1151 = vmul.f32 %v1148, %v356
        %v1155 = vrot.slane %v1149, 2
        %v1156 = vrot.slane %v1150, 2
        %v1157 = vsel %vm647, %v1155, %v1156
        %v1158 = vrot.slane %v1151, 2
        %v1159 = vsel %vm647, %v1156, %v1158
        %1160 = vrot.lane.b32.xlu0 %v1157, 127
        %v1161 = vpop.permute.xlu0 %1160
        %1162 = vrot.lane.b32.xlu0 %v1159, 127
        %v1163 = vpop.permute.xlu0 %1162
        %v1166 = vadd.f32 %v1111, %v1161
        %v1167 = vadd.f32 %v1112, %v1163
        %s1168 = sld [smem:[#allocation2 + $0x34]]
        %v1169 = vstv %s1168
        %v1170 = vmul.f32 %v1169, %v352
        %v1171 = vmul.f32 %v1169, %v324
        %v1172 = vmul.f32 %v1169, %v356
        %v1176 = vrot.slane %v1170, 2
        %v1177 = vrot.slane %v1171, 2
        %v1178 = vsel %vm647, %v1176, %v1177
        %v1179 = vrot.slane %v1172, 2
        %v1180 = vsel %vm647, %v1177, %v1179
        %1181 = vrot.lane.b32.xlu0 %v1178, 127
        %v1182 = vpop.permute.xlu0 %1181
        %1183 = vrot.lane.b32.xlu0 %v1180, 127
        %v1184 = vpop.permute.xlu0 %1183
        %v1187 = vadd.f32 %v1128, %v1182
        %v1188 = vadd.f32 %v1129, %v1184
        %s1189 = sld [smem:[#allocation2 + $0x58]]
        %v1190 = vstv %s1189
        %v1191 = vmul.f32 %v1190, %v352
        %v1192 = vmul.f32 %v1190, %v324
        %v1193 = vmul.f32 %v1190, %v356
        %v1197 = vrot.slane %v1191, 2
        %v1198 = vrot.slane %v1192, 2
        %v1199 = vsel %vm647, %v1197, %v1198
        %v1200 = vrot.slane %v1193, 2
        %v1201 = vsel %vm647, %v1198, %v1200
        %1202 = vrot.lane.b32.xlu0 %v1199, 127
        %v1203 = vpop.permute.xlu0 %1202
        %1204 = vrot.lane.b32.xlu0 %v1201, 127
        %v1205 = vpop.permute.xlu0 %1204
        %v1208 = vadd.f32 %v1145, %v1203
        %v1209 = vadd.f32 %v1146, %v1205
        %s1210 = sld [smem:[#allocation2 + $0x11]]
        %v1211 = vstv %s1210
        %v1212 = vmul.f32 %v1211, %v352
        %v1213 = vmul.f32 %v1211, %v324
        %v1214 = vmul.f32 %v1211, %v356
        %v1218 = vrot.slane %v1212, 2
        %v1219 = vrot.slane %v1213, 2
        %v1220 = vsel %vm647, %v1218, %v1219
        %v1221 = vrot.slane %v1214, 2
        %v1222 = vsel %vm647, %v1219, %v1221
        %1223 = vrot.lane.b32.xlu0 %v1220, 126
        %v1224 = vpop.permute.xlu0 %1223
        %1225 = vrot.lane.b32.xlu0 %v1222, 126
        %v1226 = vpop.permute.xlu0 %1225
        %v1229 = vadd.f32 %v1166, %v1224
        %v1230 = vadd.f32 %v1167, %v1226
        %s1231 = sld [smem:[#allocation2 + $0x35]]
        %v1232 = vstv %s1231
        %v1233 = vmul.f32 %v1232, %v352
        %v1234 = vmul.f32 %v1232, %v324
        %v1235 = vmul.f32 %v1232, %v356
        %v1239 = vrot.slane %v1233, 2
        %v1240 = vrot.slane %v1234, 2
        %v1241 = vsel %vm647, %v1239, %v1240
        %v1242 = vrot.slane %v1235, 2
        %v1243 = vsel %vm647, %v1240, %v1242
        %1244 = vrot.lane.b32.xlu0 %v1241, 126
        %v1245 = vpop.permute.xlu0 %1244
        %1246 = vrot.lane.b32.xlu0 %v1243, 126
        %v1247 = vpop.permute.xlu0 %1246
        %v1250 = vadd.f32 %v1187, %v1245
        %v1251 = vadd.f32 %v1188, %v1247
        %s1252 = sld [smem:[#allocation2 + $0x59]]
        %v1253 = vstv %s1252
        %v1254 = vmul.f32 %v1253, %v352
        %v1255 = vmul.f32 %v1253, %v324
        %v1256 = vmul.f32 %v1253, %v356
        %v1260 = vrot.slane %v1254, 2
        %v1261 = vrot.slane %v1255, 2
        %v1262 = vsel %vm647, %v1260, %v1261
        %v1263 = vrot.slane %v1256, 2
        %v1264 = vsel %vm647, %v1261, %v1263
        %1265 = vrot.lane.b32.xlu0 %v1262, 126
        %v1266 = vpop.permute.xlu0 %1265
        %1267 = vrot.lane.b32.xlu0 %v1264, 126
        %v1268 = vpop.permute.xlu0 %1267
        %v1271 = vadd.f32 %v1208, %v1266
        %v1272 = vadd.f32 %v1209, %v1268
        %s1273 = sld [smem:[#allocation2 + $0x12]]
        %v1274 = vstv %s1273
        %v1275 = vmul.f32 %v1274, %v353
        %v1276 = vmul.f32 %v1274, %v327
        %v1277 = vadd.f32 %v1229, %v1275
        %v1278 = vadd.f32 %v1230, %v1276
        %s1279 = sld [smem:[#allocation2 + $0x36]]
        %v1280 = vstv %s1279
        %v1281 = vmul.f32 %v1280, %v353
        %v1282 = vmul.f32 %v1280, %v327
        %v1283 = vadd.f32 %v1250, %v1281
        %v1284 = vadd.f32 %v1251, %v1282
        %s1285 = sld [smem:[#allocation2 + $0x5a]]
        %v1286 = vstv %s1285
        %v1287 = vmul.f32 %v1286, %v353
        %v1288 = vmul.f32 %v1286, %v327
        %v1289 = vadd.f32 %v1271, %v1287
        %v1290 = vadd.f32 %v1272, %v1288
        %s1291 = sld [smem:[#allocation2 + $0x13]]
        %v1292 = vstv %s1291
        %v1293 = vmul.f32 %v1292, %v353
        %v1294 = vmul.f32 %v1292, %v327
        %1297 = vrot.lane.b32.xlu0 %v1293, 127
        %v1298 = vpop.permute.xlu0 %1297
        %1299 = vrot.lane.b32.xlu0 %v1294, 127
        %v1300 = vpop.permute.xlu0 %1299
        %v1303 = vadd.f32 %v1277, %v1298
        %v1304 = vadd.f32 %v1278, %v1300
        %s1305 = sld [smem:[#allocation2 + $0x37]]
        %v1306 = vstv %s1305
        %v1307 = vmul.f32 %v1306, %v353
        %v1308 = vmul.f32 %v1306, %v327
        %1311 = vrot.lane.b32.xlu0 %v1307, 127
        %v1312 = vpop.permute.xlu0 %1311
        %1313 = vrot.lane.b32.xlu0 %v1308, 127
        %v1314 = vpop.permute.xlu0 %1313
        %v1317 = vadd.f32 %v1283, %v1312
        %v1318 = vadd.f32 %v1284, %v1314
        %s1319 = sld [smem:[#allocation2 + $0x5b]]
        %v1320 = vstv %s1319
        %v1321 = vmul.f32 %v1320, %v353
        %v1322 = vmul.f32 %v1320, %v327
        %1325 = vrot.lane.b32.xlu0 %v1321, 127
        %v1326 = vpop.permute.xlu0 %1325
        %1327 = vrot.lane.b32.xlu0 %v1322, 127
        %v1328 = vpop.permute.xlu0 %1327
        %v1331 = vadd.f32 %v1289, %v1326
        %v1332 = vadd.f32 %v1290, %v1328
        %s1333 = sld [smem:[#allocation2 + $0x14]]
        %v1334 = vstv %s1333
        %v1335 = vmul.f32 %v1334, %v353
        %v1336 = vmul.f32 %v1334, %v327
        %1339 = vrot.lane.b32.xlu0 %v1335, 126
        %v1340 = vpop.permute.xlu0 %1339
        %1341 = vrot.lane.b32.xlu0 %v1336, 126
        %v1342 = vpop.permute.xlu0 %1341
        %v1345 = vadd.f32 %v1303, %v1340
        %v1346 = vadd.f32 %v1304, %v1342
        %s1347 = sld [smem:[#allocation2 + $0x38]]
        %v1348 = vstv %s1347
        %v1349 = vmul.f32 %v1348, %v353
        %v1350 = vmul.f32 %v1348, %v327
        %1353 = vrot.lane.b32.xlu0 %v1349, 126
        %v1354 = vpop.permute.xlu0 %1353
        %1355 = vrot.lane.b32.xlu0 %v1350, 126
        %v1356 = vpop.permute.xlu0 %1355
        %v1359 = vadd.f32 %v1317, %v1354
        %v1360 = vadd.f32 %v1318, %v1356
        %s1361 = sld [smem:[#allocation2 + $0x5c]]
        %v1362 = vstv %s1361
        %v1363 = vmul.f32 %v1362, %v353
        %v1364 = vmul.f32 %v1362, %v327
        %1367 = vrot.lane.b32.xlu0 %v1363, 126
        %v1368 = vpop.permute.xlu0 %1367
        %1369 = vrot.lane.b32.xlu0 %v1364, 126
        %v1370 = vpop.permute.xlu0 %1369
        %v1373 = vadd.f32 %v1331, %v1368
        %v1374 = vadd.f32 %v1332, %v1370
        %s1375 = sld [smem:[#allocation2 + $0x15]]
        %v1376 = vstv %s1375
        %v1377 = vmul.f32 %v1376, %v353
        %v1378 = vmul.f32 %v1376, %v327
        %v1379 = vmul.f32 %v1376, %v357
        %v1383 = vrot.slane %v1377, 1
        %v1384 = vrot.slane %v1378, 1
        %v1385 = vsel %vm469, %v1383, %v1384
        %v1386 = vrot.slane %v1379, 1
        %v1387 = vsel %vm469, %v1384, %v1386
        %v1390 = vadd.f32 %v1345, %v1385
        %v1391 = vadd.f32 %v1346, %v1387
        %s1392 = sld [smem:[#allocation2 + $0x39]]
        %v1393 = vstv %s1392
        %v1394 = vmul.f32 %v1393, %v353
        %v1395 = vmul.f32 %v1393, %v327
        %v1396 = vmul.f32 %v1393, %v357
        %v1400 = vrot.slane %v1394, 1
        %v1401 = vrot.slane %v1395, 1
        %v1402 = vsel %vm469, %v1400, %v1401
        %v1403 = vrot.slane %v1396, 1
        %v1404 = vsel %vm469, %v1401, %v1403
        %v1407 = vadd.f32 %v1359, %v1402
        %v1408 = vadd.f32 %v1360, %v1404
        %s1409 = sld [smem:[#allocation2 + $0x5d]]
        %v1410 = vstv %s1409
        %v1411 = vmul.f32 %v1410, %v353
        %v1412 = vmul.f32 %v1410, %v327
        %v1413 = vmul.f32 %v1410, %v357
        %v1417 = vrot.slane %v1411, 1
        %v1418 = vrot.slane %v1412, 1
        %v1419 = vsel %vm469, %v1417, %v1418
        %v1420 = vrot.slane %v1413, 1
        %v1421 = vsel %vm469, %v1418, %v1420
        %v1424 = vadd.f32 %v1373, %v1419
        %v1425 = vadd.f32 %v1374, %v1421
        %s1426 = sld [smem:[#allocation2 + $0x16]]
        %v1427 = vstv %s1426
        %v1428 = vmul.f32 %v1427, %v353
        %v1429 = vmul.f32 %v1427, %v327
        %v1430 = vmul.f32 %v1427, %v357
        %v1434 = vrot.slane %v1428, 1
        %v1435 = vrot.slane %v1429, 1
        %v1436 = vsel %vm469, %v1434, %v1435
        %v1437 = vrot.slane %v1430, 1
        %v1438 = vsel %vm469, %v1435, %v1437
        %1439 = vrot.lane.b32.xlu0 %v1436, 127
        %v1440 = vpop.permute.xlu0 %1439
        %1441 = vrot.lane.b32.xlu0 %v1438, 127
        %v1442 = vpop.permute.xlu0 %1441
        %v1445 = vadd.f32 %v1390, %v1440
        %v1446 = vadd.f32 %v1391, %v1442
        %s1447 = sld [smem:[#allocation2 + $0x3a]]
        %v1448 = vstv %s1447
        %v1449 = vmul.f32 %v1448, %v353
        %v1450 = vmul.f32 %v1448, %v327
        %v1451 = vmul.f32 %v1448, %v357
        %v1455 = vrot.slane %v1449, 1
        %v1456 = vrot.slane %v1450, 1
        %v1457 = vsel %vm469, %v1455, %v1456
        %v1458 = vrot.slane %v1451, 1
        %v1459 = vsel %vm469, %v1456, %v1458
        %1460 = vrot.lane.b32.xlu0 %v1457, 127
        %v1461 = vpop.permute.xlu0 %1460
        %1462 = vrot.lane.b32.xlu0 %v1459, 127
        %v1463 = vpop.permute.xlu0 %1462
        %v1466 = vadd.f32 %v1407, %v1461
        %v1467 = vadd.f32 %v1408, %v1463
        %s1468 = sld [smem:[#allocation2 + $0x5e]]
        %v1469 = vstv %s1468
        %v1470 = vmul.f32 %v1469, %v353
        %v1471 = vmul.f32 %v1469, %v327
        %v1472 = vmul.f32 %v1469, %v357
        %v1476 = vrot.slane %v1470, 1
        %v1477 = vrot.slane %v1471, 1
        %v1478 = vsel %vm469, %v1476, %v1477
        %v1479 = vrot.slane %v1472, 1
        %v1480 = vsel %vm469, %v1477, %v1479
        %1481 = vrot.lane.b32.xlu0 %v1478, 127
        %v1482 = vpop.permute.xlu0 %1481
        %1483 = vrot.lane.b32.xlu0 %v1480, 127
        %v1484 = vpop.permute.xlu0 %1483
        %v1487 = vadd.f32 %v1424, %v1482
        %v1488 = vadd.f32 %v1425, %v1484
        %s1489 = sld [smem:[#allocation2 + $0x17]]
        %v1490 = vstv %s1489
        %v1491 = vmul.f32 %v1490, %v353
        %v1492 = vmul.f32 %v1490, %v327
        %v1493 = vmul.f32 %v1490, %v357
        %v1497 = vrot.slane %v1491, 1
        %v1498 = vrot.slane %v1492, 1
        %v1499 = vsel %vm469, %v1497, %v1498
        %v1500 = vrot.slane %v1493, 1
        %v1501 = vsel %vm469, %v1498, %v1500
        %1502 = vrot.lane.b32.xlu0 %v1499, 126
        %v1503 = vpop.permute.xlu0 %1502
        %1504 = vrot.lane.b32.xlu0 %v1501, 126
        %v1505 = vpop.permute.xlu0 %1504
        %v1508 = vadd.f32 %v1445, %v1503
        %v1509 = vadd.f32 %v1446, %v1505
        %s1510 = sld [smem:[#allocation2 + $0x3b]]
        %v1511 = vstv %s1510
        %v1512 = vmul.f32 %v1511, %v353
        %v1513 = vmul.f32 %v1511, %v327
        %v1514 = vmul.f32 %v1511, %v357
        %v1518 = vrot.slane %v1512, 1
        %v1519 = vrot.slane %v1513, 1
        %v1520 = vsel %vm469, %v1518, %v1519
        %v1521 = vrot.slane %v1514, 1
        %v1522 = vsel %vm469, %v1519, %v1521
        %1523 = vrot.lane.b32.xlu0 %v1520, 126
        %v1524 = vpop.permute.xlu0 %1523
        %1525 = vrot.lane.b32.xlu0 %v1522, 126
        %v1526 = vpop.permute.xlu0 %1525
        %v1529 = vadd.f32 %v1466, %v1524
        %v1530 = vadd.f32 %v1467, %v1526
        %s1531 = sld [smem:[#allocation2 + $0x5f]]
        %v1532 = vstv %s1531
        %v1533 = vmul.f32 %v1532, %v353
        %v1534 = vmul.f32 %v1532, %v327
        %v1535 = vmul.f32 %v1532, %v357
        %v1539 = vrot.slane %v1533, 1
        %v1540 = vrot.slane %v1534, 1
        %v1541 = vsel %vm469, %v1539, %v1540
        %v1542 = vrot.slane %v1535, 1
        %v1543 = vsel %vm469, %v1540, %v1542
        %1544 = vrot.lane.b32.xlu0 %v1541, 126
        %v1545 = vpop.permute.xlu0 %1544
        %1546 = vrot.lane.b32.xlu0 %v1543, 126
        %v1547 = vpop.permute.xlu0 %1546
        %v1550 = vadd.f32 %v1487, %v1545
        %v1551 = vadd.f32 %v1488, %v1547
        %s1552 = sld [smem:[#allocation2 + $0x18]]
        %v1553 = vstv %s1552
        %v1554 = vmul.f32 %v1553, %v353
        %v1555 = vmul.f32 %v1553, %v327
        %v1556 = vmul.f32 %v1553, %v357
        %v1560 = vrot.slane %v1554, 2
        %v1561 = vrot.slane %v1555, 2
        %v1562 = vsel %vm647, %v1560, %v1561
        %v1563 = vrot.slane %v1556, 2
        %v1564 = vsel %vm647, %v1561, %v1563
        %v1567 = vadd.f32 %v1508, %v1562
        %v1568 = vadd.f32 %v1509, %v1564
        %s1569 = sld [smem:[#allocation2 + $0x3c]]
        %v1570 = vstv %s1569
        %v1571 = vmul.f32 %v1570, %v353
        %v1572 = vmul.f32 %v1570, %v327
        %v1573 = vmul.f32 %v1570, %v357
        %v1577 = vrot.slane %v1571, 2
        %v1578 = vrot.slane %v1572, 2
        %v1579 = vsel %vm647, %v1577, %v1578
        %v1580 = vrot.slane %v1573, 2
        %v1581 = vsel %vm647, %v1578, %v1580
        %v1584 = vadd.f32 %v1529, %v1579
        %v1585 = vadd.f32 %v1530, %v1581
        %s1586 = sld [smem:[#allocation2 + $0x60]]
        %v1587 = vstv %s1586
        %v1588 = vmul.f32 %v1587, %v353
        %v1589 = vmul.f32 %v1587, %v327
        %v1590 = vmul.f32 %v1587, %v357
        %v1594 = vrot.slane %v1588, 2
        %v1595 = vrot.slane %v1589, 2
        %v1596 = vsel %vm647, %v1594, %v1595
        %v1597 = vrot.slane %v1590, 2
        %v1598 = vsel %vm647, %v1595, %v1597
        %v1601 = vadd.f32 %v1550, %v1596
        %v1602 = vadd.f32 %v1551, %v1598
        %s1603 = sld [smem:[#allocation2 + $0x19]]
        %v1604 = vstv %s1603
        %v1605 = vmul.f32 %v1604, %v353
        %v1606 = vmul.f32 %v1604, %v327
        %v1607 = vmul.f32 %v1604, %v357
        %v1611 = vrot.slane %v1605, 2
        %v1612 = vrot.slane %v1606, 2
        %v1613 = vsel %vm647, %v1611, %v1612
        %v1614 = vrot.slane %v1607, 2
        %v1615 = vsel %vm647, %v1612, %v1614
        %1616 = vrot.lane.b32.xlu0 %v1613, 127
        %v1617 = vpop.permute.xlu0 %1616
        %1618 = vrot.lane.b32.xlu0 %v1615, 127
        %v1619 = vpop.permute.xlu0 %1618
        %v1622 = vadd.f32 %v1567, %v1617
        %v1623 = vadd.f32 %v1568, %v1619
        %s1624 = sld [smem:[#allocation2 + $0x3d]]
        %v1625 = vstv %s1624
        %v1626 = vmul.f32 %v1625, %v353
        %v1627 = vmul.f32 %v1625, %v327
        %v1628 = vmul.f32 %v1625, %v357
        %v1632 = vrot.slane %v1626, 2
        %v1633 = vrot.slane %v1627, 2
        %v1634 = vsel %vm647, %v1632, %v1633
        %v1635 = vrot.slane %v1628, 2
        %v1636 = vsel %vm647, %v1633, %v1635
        %1637 = vrot.lane.b32.xlu0 %v1634, 127
        %v1638 = vpop.permute.xlu0 %1637
        %1639 = vrot.lane.b32.xlu0 %v1636, 127
        %v1640 = vpop.permute.xlu0 %1639
        %v1643 = vadd.f32 %v1584, %v1638
        %v1644 = vadd.f32 %v1585, %v1640
        %s1645 = sld [smem:[#allocation2 + $0x61]]
        %v1646 = vstv %s1645
        %v1647 = vmul.f32 %v1646, %v353
        %v1648 = vmul.f32 %v1646, %v327
        %v1649 = vmul.f32 %v1646, %v357
        %v1653 = vrot.slane %v1647, 2
        %v1654 = vrot.slane %v1648, 2
        %v1655 = vsel %vm647, %v1653, %v1654
        %v1656 = vrot.slane %v1649, 2
        %v1657 = vsel %vm647, %v1654, %v1656
        %1658 = vrot.lane.b32.xlu0 %v1655, 127
        %v1659 = vpop.permute.xlu0 %1658
        %1660 = vrot.lane.b32.xlu0 %v1657, 127
        %v1661 = vpop.permute.xlu0 %1660
        %v1664 = vadd.f32 %v1601, %v1659
        %v1665 = vadd.f32 %v1602, %v1661
        %s1666 = sld [smem:[#allocation2 + $0x1a]]
        %v1667 = vstv %s1666
        %v1668 = vmul.f32 %v1667, %v353
        %v1669 = vmul.f32 %v1667, %v327
        %v1670 = vmul.f32 %v1667, %v357
        %v1674 = vrot.slane %v1668, 2
        %v1675 = vrot.slane %v1669, 2
        %v1676 = vsel %vm647, %v1674, %v1675
        %v1677 = vrot.slane %v1670, 2
        %v1678 = vsel %vm647, %v1675, %v1677
        %1679 = vrot.lane.b32.xlu0 %v1676, 126
        %v1680 = vpop.permute.xlu0 %1679
        %1681 = vrot.lane.b32.xlu0 %v1678, 126
        %v1682 = vpop.permute.xlu0 %1681
        %v1685 = vadd.f32 %v1622, %v1680
        %v1686 = vadd.f32 %v1623, %v1682
        %s1687 = sld [smem:[#allocation2 + $0x3e]]
        %v1688 = vstv %s1687
        %v1689 = vmul.f32 %v1688, %v353
        %v1690 = vmul.f32 %v1688, %v327
        %v1691 = vmul.f32 %v1688, %v357
        %v1695 = vrot.slane %v1689, 2
        %v1696 = vrot.slane %v1690, 2
        %v1697 = vsel %vm647, %v1695, %v1696
        %v1698 = vrot.slane %v1691, 2
        %v1699 = vsel %vm647, %v1696, %v1698
        %1700 = vrot.lane.b32.xlu0 %v1697, 126
        %v1701 = vpop.permute.xlu0 %1700
        %1702 = vrot.lane.b32.xlu0 %v1699, 126
        %v1703 = vpop.permute.xlu0 %1702
        %v1706 = vadd.f32 %v1643, %v1701
        %v1707 = vadd.f32 %v1644, %v1703
        %s1708 = sld [smem:[#allocation2 + $0x62]]
        %v1709 = vstv %s1708
        %v1710 = vmul.f32 %v1709, %v353
        %v1711 = vmul.f32 %v1709, %v327
        %v1712 = vmul.f32 %v1709, %v357
        %v1716 = vrot.slane %v1710, 2
        %v1717 = vrot.slane %v1711, 2
        %v1718 = vsel %vm647, %v1716, %v1717
        %v1719 = vrot.slane %v1712, 2
        %v1720 = vsel %vm647, %v1717, %v1719
        %1721 = vrot.lane.b32.xlu0 %v1718, 126
        %v1722 = vpop.permute.xlu0 %1721
        %1723 = vrot.lane.b32.xlu0 %v1720, 126
        %v1724 = vpop.permute.xlu0 %1723
        %v1727 = vadd.f32 %v1664, %v1722
        %v1728 = vadd.f32 %v1665, %v1724
        %s1729 = sld [smem:[#allocation2 + $0x1b]]
        %v1730 = vstv %s1729
        %v1731 = vmul.f32 %v1730, %v354
        %v1732 = vmul.f32 %v1730, %v330
        %v1733 = vadd.f32 %v1685, %v1731
        %v1734 = vadd.f32 %v1686, %v1732
        %s1735 = sld [smem:[#allocation2 + $0x3f]]
        %v1736 = vstv %s1735
        %v1737 = vmul.f32 %v1736, %v354
        %v1738 = vmul.f32 %v1736, %v330
        %v1739 = vadd.f32 %v1706, %v1737
        %v1740 = vadd.f32 %v1707, %v1738
        %s1741 = sld [smem:[#allocation2 + $0x63]]
        %v1742 = vstv %s1741
        %v1743 = vmul.f32 %v1742, %v354
        %v1744 = vmul.f32 %v1742, %v330
        %v1745 = vadd.f32 %v1727, %v1743
        %v1746 = vadd.f32 %v1728, %v1744
        %s1747 = sld [smem:[#allocation2 + $0x1c]]
        %v1748 = vstv %s1747
        %v1749 = vmul.f32 %v1748, %v354
        %v1750 = vmul.f32 %v1748, %v330
        %1753 = vrot.lane.b32.xlu0 %v1749, 127
        %v1754 = vpop.permute.xlu0 %1753
        %1755 = vrot.lane.b32.xlu0 %v1750, 127
        %v1756 = vpop.permute.xlu0 %1755
        %v1759 = vadd.f32 %v1733, %v1754
        %v1760 = vadd.f32 %v1734, %v1756
        %s1761 = sld [smem:[#allocation2 + $0x40]]
        %v1762 = vstv %s1761
        %v1763 = vmul.f32 %v1762, %v354
        %v1764 = vmul.f32 %v1762, %v330
        %1767 = vrot.lane.b32.xlu0 %v1763, 127
        %v1768 = vpop.permute.xlu0 %1767
        %1769 = vrot.lane.b32.xlu0 %v1764, 127
        %v1770 = vpop.permute.xlu0 %1769
        %v1773 = vadd.f32 %v1739, %v1768
        %v1774 = vadd.f32 %v1740, %v1770
        %s1775 = sld [smem:[#allocation2 + $0x64]]
        %v1776 = vstv %s1775
        %v1777 = vmul.f32 %v1776, %v354
        %v1778 = vmul.f32 %v1776, %v330
        %1781 = vrot.lane.b32.xlu0 %v1777, 127
        %v1782 = vpop.permute.xlu0 %1781
        %1783 = vrot.lane.b32.xlu0 %v1778, 127
        %v1784 = vpop.permute.xlu0 %1783
        %v1787 = vadd.f32 %v1745, %v1782
        %v1788 = vadd.f32 %v1746, %v1784
        %s1789 = sld [smem:[#allocation2 + $0x1d]]
        %v1790 = vstv %s1789
        %v1791 = vmul.f32 %v1790, %v354
        %v1792 = vmul.f32 %v1790, %v330
        %1795 = vrot.lane.b32.xlu0 %v1791, 126
        %v1796 = vpop.permute.xlu0 %1795
        %1797 = vrot.lane.b32.xlu0 %v1792, 126
        %v1798 = vpop.permute.xlu0 %1797
        %v1801 = vadd.f32 %v1759, %v1796
        %v1802 = vadd.f32 %v1760, %v1798
        %s1803 = sld [smem:[#allocation2 + $0x41]]
        %v1804 = vstv %s1803
        %v1805 = vmul.f32 %v1804, %v354
        %v1806 = vmul.f32 %v1804, %v330
        %1809 = vrot.lane.b32.xlu0 %v1805, 126
        %v1810 = vpop.permute.xlu0 %1809
        %1811 = vrot.lane.b32.xlu0 %v1806, 126
        %v1812 = vpop.permute.xlu0 %1811
        %v1815 = vadd.f32 %v1773, %v1810
        %v1816 = vadd.f32 %v1774, %v1812
        %s1817 = sld [smem:[#allocation2 + $0x65]]
        %v1818 = vstv %s1817
        %v1819 = vmul.f32 %v1818, %v354
        %v1820 = vmul.f32 %v1818, %v330
        %1823 = vrot.lane.b32.xlu0 %v1819, 126
        %v1824 = vpop.permute.xlu0 %1823
        %1825 = vrot.lane.b32.xlu0 %v1820, 126
        %v1826 = vpop.permute.xlu0 %1825
        %v1829 = vadd.f32 %v1787, %v1824
        %v1830 = vadd.f32 %v1788, %v1826
        %s1831 = sld [smem:[#allocation2 + $0x1e]]
        %v1832 = vstv %s1831
        %v1833 = vmul.f32 %v1832, %v354
        %v1834 = vmul.f32 %v1832, %v330
        %v1835 = vmul.f32 %v1832, %v358
        %v1839 = vrot.slane %v1833, 1
        %v1840 = vrot.slane %v1834, 1
        %v1841 = vsel %vm469, %v1839, %v1840
        %v1842 = vrot.slane %v1835, 1
        %v1843 = vsel %vm469, %v1840, %v1842
        %v1846 = vadd.f32 %v1801, %v1841
        %v1847 = vadd.f32 %v1802, %v1843
        %s1848 = sld [smem:[#allocation2 + $0x42]]
        %v1849 = vstv %s1848
        %v1850 = vmul.f32 %v1849, %v354
        %v1851 = vmul.f32 %v1849, %v330
        %v1852 = vmul.f32 %v1849, %v358
        %v1856 = vrot.slane %v1850, 1
        %v1857 = vrot.slane %v1851, 1
        %v1858 = vsel %vm469, %v1856, %v1857
        %v1859 = vrot.slane %v1852, 1
        %v1860 = vsel %vm469, %v1857, %v1859
        %v1863 = vadd.f32 %v1815, %v1858
        %v1864 = vadd.f32 %v1816, %v1860
        %s1865 = sld [smem:[#allocation2 + $0x66]]
        %v1866 = vstv %s1865
        %v1867 = vmul.f32 %v1866, %v354
        %v1868 = vmul.f32 %v1866, %v330
        %v1869 = vmul.f32 %v1866, %v358
        %v1873 = vrot.slane %v1867, 1
        %v1874 = vrot.slane %v1868, 1
        %v1875 = vsel %vm469, %v1873, %v1874
        %v1876 = vrot.slane %v1869, 1
        %v1877 = vsel %vm469, %v1874, %v1876
        %v1880 = vadd.f32 %v1829, %v1875
        %v1881 = vadd.f32 %v1830, %v1877
        %s1882 = sld [smem:[#allocation2 + $0x1f]]
        %v1883 = vstv %s1882
        %v1884 = vmul.f32 %v1883, %v354
        %v1885 = vmul.f32 %v1883, %v330
        %v1886 = vmul.f32 %v1883, %v358
        %v1890 = vrot.slane %v1884, 1
        %v1891 = vrot.slane %v1885, 1
        %v1892 = vsel %vm469, %v1890, %v1891
        %v1893 = vrot.slane %v1886, 1
        %v1894 = vsel %vm469, %v1891, %v1893
        %1895 = vrot.lane.b32.xlu0 %v1892, 127
        %v1896 = vpop.permute.xlu0 %1895
        %1897 = vrot.lane.b32.xlu0 %v1894, 127
        %v1898 = vpop.permute.xlu0 %1897
        %v1901 = vadd.f32 %v1846, %v1896
        %v1902 = vadd.f32 %v1847, %v1898
        %s1903 = sld [smem:[#allocation2 + $0x43]]
        %v1904 = vstv %s1903
        %v1905 = vmul.f32 %v1904, %v354
        %v1906 = vmul.f32 %v1904, %v330
        %v1907 = vmul.f32 %v1904, %v358
        %v1911 = vrot.slane %v1905, 1
        %v1912 = vrot.slane %v1906, 1
        %v1913 = vsel %vm469, %v1911, %v1912
        %v1914 = vrot.slane %v1907, 1
        %v1915 = vsel %vm469, %v1912, %v1914
        %1916 = vrot.lane.b32.xlu0 %v1913, 127
        %v1917 = vpop.permute.xlu0 %1916
        %1918 = vrot.lane.b32.xlu0 %v1915, 127
        %v1919 = vpop.permute.xlu0 %1918
        %v1922 = vadd.f32 %v1863, %v1917
        %v1923 = vadd.f32 %v1864, %v1919
        %s1924 = sld [smem:[#allocation2 + $0x67]]
        %v1925 = vstv %s1924
        %v1926 = vmul.f32 %v1925, %v354
        %v1927 = vmul.f32 %v1925, %v330
        %v1928 = vmul.f32 %v1925, %v358
        %v1932 = vrot.slane %v1926, 1
        %v1933 = vrot.slane %v1927, 1
        %v1934 = vsel %vm469, %v1932, %v1933
        %v1935 = vrot.slane %v1928, 1
        %v1936 = vsel %vm469, %v1933, %v1935
        %1937 = vrot.lane.b32.xlu0 %v1934, 127
        %v1938 = vpop.permute.xlu0 %1937
        %1939 = vrot.lane.b32.xlu0 %v1936, 127
        %v1940 = vpop.permute.xlu0 %1939
        %v1943 = vadd.f32 %v1880, %v1938
        %v1944 = vadd.f32 %v1881, %v1940
        %s1945 = sld [smem:[#allocation2 + $0x20]]
        %v1946 = vstv %s1945
        %v1947 = vmul.f32 %v1946, %v354
        %v1948 = vmul.f32 %v1946, %v330
        %v1949 = vmul.f32 %v1946, %v358
        %v1953 = vrot.slane %v1947, 1
        %v1954 = vrot.slane %v1948, 1
        %v1955 = vsel %vm469, %v1953, %v1954
        %v1956 = vrot.slane %v1949, 1
        %v1957 = vsel %vm469, %v1954, %v1956
        %1958 = vrot.lane.b32.xlu0 %v1955, 126
        %v1959 = vpop.permute.xlu0 %1958
        %1960 = vrot.lane.b32.xlu0 %v1957, 126
        %v1961 = vpop.permute.xlu0 %1960
        %v1964 = vadd.f32 %v1901, %v1959
        %v1965 = vadd.f32 %v1902, %v1961
        %s1966 = sld [smem:[#allocation2 + $0x44]]
        %v1967 = vstv %s1966
        %v1968 = vmul.f32 %v1967, %v354
        %v1969 = vmul.f32 %v1967, %v330
        %v1970 = vmul.f32 %v1967, %v358
        %v1974 = vrot.slane %v1968, 1
        %v1975 = vrot.slane %v1969, 1
        %v1976 = vsel %vm469, %v1974, %v1975
        %v1977 = vrot.slane %v1970, 1
        %v1978 = vsel %vm469, %v1975, %v1977
        %1979 = vrot.lane.b32.xlu0 %v1976, 126
        %v1980 = vpop.permute.xlu0 %1979
        %1981 = vrot.lane.b32.xlu0 %v1978, 126
        %v1982 = vpop.permute.xlu0 %1981
        %v1985 = vadd.f32 %v1922, %v1980
        %v1986 = vadd.f32 %v1923, %v1982
        %s1987 = sld [smem:[#allocation2 + $0x68]]
        %v1988 = vstv %s1987
        %v1989 = vmul.f32 %v1988, %v354
        %v1990 = vmul.f32 %v1988, %v330
        %v1991 = vmul.f32 %v1988, %v358
        %v1995 = vrot.slane %v1989, 1
        %v1996 = vrot.slane %v1990, 1
        %v1997 = vsel %vm469, %v1995, %v1996
        %v1998 = vrot.slane %v1991, 1
        %v1999 = vsel %vm469, %v1996, %v1998
        %2000 = vrot.lane.b32.xlu0 %v1997, 126
        %v2001 = vpop.permute.xlu0 %2000
        %2002 = vrot.lane.b32.xlu0 %v1999, 126
        %v2003 = vpop.permute.xlu0 %2002
        %v2006 = vadd.f32 %v1943, %v2001
        %v2007 = vadd.f32 %v1944, %v2003
        %s2008 = sld [smem:[#allocation2 + $0x21]]
        %v2009 = vstv %s2008
        %v2010 = vmul.f32 %v2009, %v354
        %v2011 = vmul.f32 %v2009, %v330
        %v2012 = vmul.f32 %v2009, %v358
        %v2016 = vrot.slane %v2010, 2
        %v2017 = vrot.slane %v2011, 2
        %v2018 = vsel %vm647, %v2016, %v2017
        %v2019 = vrot.slane %v2012, 2
        %v2020 = vsel %vm647, %v2017, %v2019
        %v2023 = vadd.f32 %v1964, %v2018
        %v2024 = vadd.f32 %v1965, %v2020
        %s2025 = sld [smem:[#allocation2 + $0x45]]
        %v2026 = vstv %s2025
        %v2027 = vmul.f32 %v2026, %v354
        %v2028 = vmul.f32 %v2026, %v330
        %v2029 = vmul.f32 %v2026, %v358
        %v2033 = vrot.slane %v2027, 2
        %v2034 = vrot.slane %v2028, 2
        %v2035 = vsel %vm647, %v2033, %v2034
        %v2036 = vrot.slane %v2029, 2
        %v2037 = vsel %vm647, %v2034, %v2036
        %v2040 = vadd.f32 %v1985, %v2035
        %v2041 = vadd.f32 %v1986, %v2037
        %s2042 = sld [smem:[#allocation2 + $0x69]]
        %v2043 = vstv %s2042
        %v2044 = vmul.f32 %v2043, %v354
        %v2045 = vmul.f32 %v2043, %v330
        %v2046 = vmul.f32 %v2043, %v358
        %v2050 = vrot.slane %v2044, 2
        %v2051 = vrot.slane %v2045, 2
        %v2052 = vsel %vm647, %v2050, %v2051
        %v2053 = vrot.slane %v2046, 2
        %v2054 = vsel %vm647, %v2051, %v2053
        %v2057 = vadd.f32 %v2006, %v2052
        %v2058 = vadd.f32 %v2007, %v2054
        %s2059 = sld [smem:[#allocation2 + $0x22]]
        %v2060 = vstv %s2059
        %v2061 = vmul.f32 %v2060, %v354
        %v2062 = vmul.f32 %v2060, %v330
        %v2063 = vmul.f32 %v2060, %v358
        %v2067 = vrot.slane %v2061, 2
        %v2068 = vrot.slane %v2062, 2
        %v2069 = vsel %vm647, %v2067, %v2068
        %v2070 = vrot.slane %v2063, 2
        %v2071 = vsel %vm647, %v2068, %v2070
        %2072 = vrot.lane.b32.xlu0 %v2069, 127
        %v2073 = vpop.permute.xlu0 %2072
        %2074 = vrot.lane.b32.xlu0 %v2071, 127
        %v2075 = vpop.permute.xlu0 %2074
        %v2078 = vadd.f32 %v2023, %v2073
        %v2079 = vadd.f32 %v2024, %v2075
        %s2080 = sld [smem:[#allocation2 + $0x46]]
        %v2081 = vstv %s2080
        %v2082 = vmul.f32 %v2081, %v354
        %v2083 = vmul.f32 %v2081, %v330
        %v2084 = vmul.f32 %v2081, %v358
        %v2088 = vrot.slane %v2082, 2
        %v2089 = vrot.slane %v2083, 2
        %v2090 = vsel %vm647, %v2088, %v2089
        %v2091 = vrot.slane %v2084, 2
        %v2092 = vsel %vm647, %v2089, %v2091
        %2093 = vrot.lane.b32.xlu0 %v2090, 127
        %v2094 = vpop.permute.xlu0 %2093
        %2095 = vrot.lane.b32.xlu0 %v2092, 127
        %v2096 = vpop.permute.xlu0 %2095
        %v2099 = vadd.f32 %v2040, %v2094
        %v2100 = vadd.f32 %v2041, %v2096
        %s2101 = sld [smem:[#allocation2 + $0x6a]]
        %v2102 = vstv %s2101
        %v2103 = vmul.f32 %v2102, %v354
        %v2104 = vmul.f32 %v2102, %v330
        %v2105 = vmul.f32 %v2102, %v358
        %v2109 = vrot.slane %v2103, 2
        %v2110 = vrot.slane %v2104, 2
        %v2111 = vsel %vm647, %v2109, %v2110
        %v2112 = vrot.slane %v2105, 2
        %v2113 = vsel %vm647, %v2110, %v2112
        %2114 = vrot.lane.b32.xlu0 %v2111, 127
        %v2115 = vpop.permute.xlu0 %2114
        %2116 = vrot.lane.b32.xlu0 %v2113, 127
        %v2117 = vpop.permute.xlu0 %2116
        %v2120 = vadd.f32 %v2057, %v2115
        %v2121 = vadd.f32 %v2058, %v2117
        %s2122 = sld [smem:[#allocation2 + $0x23]]
        %v2123 = vstv %s2122
        %v2124 = vmul.f32 %v2123, %v354
        %v2125 = vmul.f32 %v2123, %v330
        %v2126 = vmul.f32 %v2123, %v358
        %v2130 = vrot.slane %v2124, 2
        %v2131 = vrot.slane %v2125, 2
        %v2132 = vsel %vm647, %v2130, %v2131
        %v2133 = vrot.slane %v2126, 2
        %v2134 = vsel %vm647, %v2131, %v2133
        %2135 = vrot.lane.b32.xlu0 %v2132, 126
        %v2136 = vpop.permute.xlu0 %2135
        %2137 = vrot.lane.b32.xlu0 %v2134, 126
        %v2138 = vpop.permute.xlu0 %2137
        %v2141 = vadd.f32 %v2078, %v2136
        %v2142 = vadd.f32 %v2079, %v2138
        %s2143 = sld [smem:[#allocation2 + $0x47]]
        %v2144 = vstv %s2143
        %v2145 = vmul.f32 %v2144, %v354
        %v2146 = vmul.f32 %v2144, %v330
        %v2147 = vmul.f32 %v2144, %v358
        %v2151 = vrot.slane %v2145, 2
        %v2152 = vrot.slane %v2146, 2
        %v2153 = vsel %vm647, %v2151, %v2152
        %v2154 = vrot.slane %v2147, 2
        %v2155 = vsel %vm647, %v2152, %v2154
        %2156 = vrot.lane.b32.xlu0 %v2153, 126
        %v2157 = vpop.permute.xlu0 %2156
        %2158 = vrot.lane.b32.xlu0 %v2155, 126
        %v2159 = vpop.permute.xlu0 %2158
        %v2162 = vadd.f32 %v2099, %v2157
        %v2163 = vadd.f32 %v2100, %v2159
        %s2164 = sld [smem:[#allocation2 + $0x6b]]
        %v2165 = vstv %s2164
        %v2166 = vmul.f32 %v2165, %v354
        %v2167 = vmul.f32 %v2165, %v330
        %v2168 = vmul.f32 %v2165, %v358
        %v2172 = vrot.slane %v2166, 2
        %v2173 = vrot.slane %v2167, 2
        %v2174 = vsel %vm647, %v2172, %v2173
        %v2175 = vrot.slane %v2168, 2
        %v2176 = vsel %vm647, %v2173, %v2175
        %2177 = vrot.lane.b32.xlu0 %v2174, 126
        %v2178 = vpop.permute.xlu0 %2177
        %2179 = vrot.lane.b32.xlu0 %v2176, 126
        %v2180 = vpop.permute.xlu0 %2179
        %v2183 = vadd.f32 %v2120, %v2178
        %v2184 = vadd.f32 %v2121, %v2180
        %s2185 = sld [smem:[#allocation5]]
        %v2186 = vstv %s2185
        %v2187 = vadd.f32 %v2141, %v2186
        %v2188 = vadd.f32 %v2142, %v2186
        %v2189 = vtanh.pop %v2187
        %v2190 = vtanh.pop %v2188
        %vm2191 = vcmask 130048
        %2192 = vst.msk [vmem:[%s190] sm:$0xff] %vm2191, %v2189
        %2193 = vst.msk [vmem:[%s190 + $0x8] sm:$0xff] %vm2191, %v2190
        %s2194 = sld [smem:[#allocation5 + $0x1]]
        %v2195 = vstv %s2194
        %v2196 = vadd.f32 %v2162, %v2195
        %v2197 = vadd.f32 %v2163, %v2195
        %v2198 = vtanh.pop %v2196
        %v2199 = vtanh.pop %v2197
        %s2200 = scalar_lea.vmem %s190, 16 [#allocation7]
        %2201 = vst.msk [vmem:[%s2200] sm:$0xff] %vm2191, %v2198
        %2202 = vst.msk [vmem:[%s2200 + $0x8] sm:$0xff] %vm2191, %v2199
        %s2203 = sld [smem:[#allocation5 + $0x2]]
        %v2204 = vstv %s2203
        %v2205 = vadd.f32 %v2183, %v2204
        %v2206 = vadd.f32 %v2184, %v2204
        %v2207 = vtanh.pop %v2205
        %v2208 = vtanh.pop %v2206
        %s2209 = scalar_lea.vmem %s190, 32 [#allocation7]
        %2210 = vst.msk [vmem:[%s2209] sm:$0xff] %vm2191, %v2207
        %2211 = vst.msk [vmem:[%s2209 + $0x8] sm:$0xff] %vm2191, %v2208
        %s2212 = sand.u32 %s95, 1
        %s2213 = scalar_lea.sflag [#allocation3], %s2212
        %s2214 = sand.u32 %s95, 1
        %s2215 = smul.addr %s2214, 48
        %s2216 = scalar_lea.vmem [#allocation7], %s2215
        // Predicated region
        $region41: #{get_image_forward.1} parent=31 // pred_check
          %p2217 = pneg %p105
        $region42: #{get_image_forward.1} parent=31 // pred_check_branch
          %2219 = sbr.rel (%p2217) target = $region44
        $region43: #{get_image_forward.1} parent=31 // pred_region
          %2221 = vsyncadd %s2213, 0
          %s2222 = smul.addr %s19, 6
          %s2223 = smul.addr %s2222, 8
          %s2224 = scalar_lea.hbm %s3, %s2223
          %s2225 = sshll.u32 %s2216, 4
          %s2226 = int_to_ptr.vmem [resolvable:$true] %s2225
          %s2227 = sshll.u32 %s2224, 4
          %s2228 = int_to_ptr.hbm [resolvable:$true] %s2227
          %2233 = dma.vmem_to_hbm [thread:$0]  %s2226, 768, %s2228, %s2213, 128, 128, 8
        $region44: #{get_image_forward.1} parent=31 // pred_fallthru
          _
      $region32: #{get_image_forward.1} parent=5 // pred_fallthru
        _
      %p2234 = scmp.le.s32.totalorder 2, %s14
      // Predicated region
      $region45: #{get_image_forward.1} parent=5 // pred_check
        %p2235 = pneg %p2234
      $region46: #{get_image_forward.1} parent=5 // pred_check_branch
        %2237 = sbr.rel (%p2235) target = $region48
      $region47: #{get_image_forward.1} parent=5 // pred_region
        %s2238 = ssub.s32 %s14, 2
        // Predicated region
        $region49: #{get_image_forward.1} parent=47 // pred_check
          %p2239 = pneg %p111
        $region50: #{get_image_forward.1} parent=47 // pred_check_branch
          %2241 = sbr.rel (%p2239) target = $region52
        $region51: #{get_image_forward.1} parent=47 // pred_region
          %s2242 = sand.u32 %s96, 1
          %s2243 = scalar_lea.sflag [#allocation3], %s2242
          %s2244 = sand.u32 %s96, 1
          %s2245 = smul.addr %s2244, 48
          %s2246 = scalar_lea.vmem [#allocation7], %s2245
          %2248 = dma.done %s2243, 768
        $region52: #{get_image_forward.1} parent=47 // pred_fallthru
          _
      $region48: #{get_image_forward.1} parent=5 // pred_fallthru
        _
    $region6: #{get_image_forward.1} parent=1 // loop_footer
      %s18 = sadd.s32 1, %s14
    $region7: #{get_image_forward.1} parent=1 // loop_footer_branch
      %13 = sbr.rel target = $region3
    $region8: #{get_image_forward.1} parent=1 // loop_exit
      _
    %2249 = vsyncpa [#allocation3], 1
    %s2250 = scalar_lea.sflag [#allocation3], 1
    %2251 = vsyncpa %s2250, 1
    %2252 = vsyncpa [#allocation4], 1
    %s2253 = scalar_lea.sflag [#allocation4], 1
    %2254 = vsyncpa %s2253, 1
    %2255 = vsyncpa [#allocation6], 1

</llo_original>
